<compile_context>
chip_gen: v6e
topology: v6e:2x2x1
jax: 0.10.0
libtpu: 0.0.40
codegen_flags: <defaults>
</compile_context>

<pallas_src>
import functools

import jax
import jax.numpy as jnp
from jax.experimental import pallas as pl
from jax.experimental.pallas import tpu as pltpu

IMAGENET_MEAN = jnp.array([0.485, 0.456, 0.406], jnp.float32)
IMAGENET_STD = jnp.array([0.229, 0.224, 0.225], jnp.float32)


def _device_kind():
    try:
        return jax.devices()[0].device_kind.lower()
    except Exception:  # pragma: no cover
        return ""


def _num_tensorcores_per_chip():
    # v7x has 2 TensorCores per chip; v5e/v6e have 1.
    return 2 if "v7" in _device_kind() else 1


def _use_bf16_epilogue():
    # v6e/v7x have packed bf16 VALU; v5e/v4 do not -> keep f32 epilogue there.
    kind = _device_kind()
    return ("v6" in kind) or ("v7" in kind)


# ---------------------------------------------------------------------------
# Pallas kernel: FeatCAE (encoder + decoder) + per-pixel reconstruction MSE
#   x_ref:   (C0, tile_p)  f32    pooled features, pixels on the lane axis
#   w_i:     (Cout, Cin)   bf16   1x1-conv weights (torch layout), BN folded
#   b_i:     (Cout, 1)     f32    biases (BN folded), broadcast over lanes
#   amap_ref:(1, tile_p)   f32    per-pixel channel-mean squared error
# ---------------------------------------------------------------------------
def make_featcae_kernel(c0, epilogue_bf16):
    bf16 = jnp.bfloat16
    f32 = jnp.float32

    def bias_act(acc_f32, b_ref, relu=True):
        # acc_f32: f32 MXU accumulator (Cout, tile_p). Returns bf16 activation
        # ready to feed the next matmul.
        if epilogue_bf16:
            h = acc_f32.astype(bf16) + b_ref[...].astype(bf16)
            if relu:
                h = jnp.maximum(h, 0)
            return h
        h = acc_f32 + b_ref[...]
        if relu:
            h = jnp.maximum(h, 0.0)
        return h.astype(bf16)

    def kernel(x_ref,
               w1, b1, w2, b2, w3, b3, w4, b4, w5, b5, w6, b6,
               amap_ref):
        xf = x_ref[...]                 # f32 (C0, TP) -- kept f32 for the MSE
        xb = xf.astype(bf16)            # bf16 copy only for the first matmul

        # encoder: conv1x1+BN+ReLU, conv1x1+BN+ReLU, conv1x1
        h = bias_act(jnp.dot(w1[...], xb, preferred_element_type=f32), b1)
        h = bias_act(jnp.dot(w2[...], h, preferred_element_type=f32), b2)
        z = bias_act(jnp.dot(w3[...], h, preferred_element_type=f32), b3,
                     relu=False)
        # decoder: conv1x1+BN+ReLU, conv1x1+BN+ReLU, conv1x1
        h = bias_act(jnp.dot(w4[...], z, preferred_element_type=f32), b4)
        h = bias_act(jnp.dot(w5[...], h, preferred_element_type=f32), b5)
        # final reconstruction stays f32 (it feeds the residual)
        rec = jnp.dot(w6[...], h, preferred_element_type=f32) + b6[...]

        # eval-path: anomaly_map = mean((ae_out - features)^2, dim=channel)
        # Accumulate sum-of-squares over 8-sublane channel chunks to avoid
        # materializing full (C0, TP) diff / diff^2 temps.
        tp = xf.shape[1]
        acc = jnp.zeros((1, tp), f32)
        for c in range(0, c0, 8):
            d = rec[c:c + 8, :] - xf[c:c + 8, :]
            acc = acc + jnp.sum(d * d, axis=0, keepdims=True)
        amap_ref[...] = acc * (1.0 / float(c0))    # constant multiply, no div

    return kernel


def run_autoencoder_anomaly(feats2d, ae_params, tile_p=2048):
    """feats2d: (C0, P) float32 -> (P,) per-pixel anomaly score (f32)."""
    C0, P = feats2d.shape
    num_tc = _num_tensorcores_per_chip()

    # Tile on the pixel (lane) axis.  Keep tile_p a multiple of 128 (unmasked
    # lane-dense stores).  On single-TC chips (v5e/v6e) just use the largest
    # 128-multiple tile that covers P (a 1-step grid is fine).  On v7x aim
    # for >= num_tc tiles so the "parallel" grid axis splits across both TCs.
    p128 = pl.cdiv(P, 128) * 128
    if num_tc > 1 and P > 128 * num_tc:
        per_core = pl.cdiv(pl.cdiv(P, num_tc), 128) * 128
        tile_p = max(128, min(tile_p, per_core))
    else:
        tile_p = max(128, min(tile_p, p128))
    p_pad = pl.cdiv(P, tile_p) * tile_p
    num_tiles = p_pad // tile_p

    x = feats2d.astype(jnp.float32)
    if p_pad != P:
        x = jnp.pad(x, ((0, 0), (0, p_pad - P)))

    flat_args = []
    weight_specs = []
    for (w, b) in ae_params:
        flat_args += [w, b]
        # constant index_map -> weights/biases are DMA'd once, not per step
        weight_specs += [pl.BlockSpec(w.shape, lambda i: (0, 0)),
                         pl.BlockSpec(b.shape, lambda i: (0, 0))]

    kernel = make_featcae_kernel(C0, _use_bf16_epilogue())

    out = pl.pallas_call(
        kernel,
        out_shape=jax.ShapeDtypeStruct((num_tiles, tile_p), jnp.float32),
        grid_spec=pltpu.PrefetchScalarGridSpec(
            num_scalar_prefetch=0,
            grid=(num_tiles,),
            in_specs=[pl.BlockSpec((C0, tile_p), lambda i: (0, i))] + weight_specs,
            out_specs=pl.BlockSpec((1, tile_p), lambda i: (i, 0)),
        ),
        compiler_params=pltpu.CompilerParams(
            dimension_semantics=("parallel",)),
    )(x, *flat_args)
    return out.reshape(p_pad)[:P]


# ---------------------------------------------------------------------------
# Deterministic FeatCAE parameters (eval-mode BatchNorm folded into conv).
# Weights stored bf16 in torch (Cout, Cin) layout; biases f32 as (Cout, 1).
# ---------------------------------------------------------------------------
def init_featcae_params(key, c0, cd):
    h1 = (c0 + 2 * cd) // 2
    h2 = 2 * cd
    dims = [(c0, h1), (h1, h2), (h2, cd), (cd, h2), (h2, h1), (h1, c0)]
    bn_after = [True, True, False, True, True, False]
    eps = 1e-5
    params = []
    for i, (cin, cout) in enumerate(dims):
        key, kw, kb = jax.random.split(key, 3)
        bound = float(cin) ** -0.5              # torch Conv2d default init bound
        w = jax.random.uniform(kw, (cout, cin), jnp.float32, -bound, bound)
        b = jax.random.uniform(kb, (cout, 1), jnp.float32, -bound, bound)
        if bn_after[i]:
            # eval-mode BN with fresh stats (gamma=1, beta=0, mean=0, var=1):
            # y = conv(x) / sqrt(1 + eps)  -> fold scale into W and b (exact).
            scale = 1.0 / jnp.sqrt(1.0 + eps)
            w = w * scale
            b = b * scale
        params.append((w.astype(jnp.bfloat16), b))
    return params


# ---------------------------------------------------------------------------
# Glue: normalize, synthetic backbone, interpolation, avg-pool
# ---------------------------------------------------------------------------
def synthetic_backbone(x, key, channels=(16, 32, 64, 128)):
    # TODO(synk): stand-in for the pretrained timm `features_only` backbone
    # (no checkpoint load) — deterministic multi-scale 1x1-conv + pool pyramid.
    feats = []
    n, c, h, w = x.shape
    for i, cout in enumerate(channels):
        f = 2 ** (i + 1)
        key, kw = jax.random.split(key)
        pooled = x.reshape(n, c, h // f, f, w // f, f).mean(axis=(3, 5))
        wmat = jax.random.uniform(kw, (cout, c), jnp.float32, -1.0, 1.0)
        feats.append(jnp.maximum(jnp.einsum('nchw,oc->nohw', pooled, wmat), 0.0))
    return feats


def nearest_resize(x, size):
    # matches F.interpolate(..., mode='nearest') index rule: floor(i * Hi / Ho)
    n, c, hi, wi = x.shape
    ho, wo = size
    ri = (jnp.arange(ho) * hi // ho).astype(jnp.int32)
    ci = (jnp.arange(wo) * wi // wo).astype(jnp.int32)
    return x[:, :, ri[:, None], ci[None, :]]


def bilinear_resize_align_corners(x, size):
    # matches F.interpolate(..., mode='bilinear', align_corners=True)
    n, c, hi, wi = x.shape
    ho, wo = size
    ys = jnp.arange(ho) * ((hi - 1) / (ho - 1)) if ho > 1 else jnp.zeros((ho,))
    xs = jnp.arange(wo) * ((wi - 1) / (wo - 1)) if wo > 1 else jnp.zeros((wo,))
    y0 = jnp.floor(ys).astype(jnp.int32)
    x0 = jnp.floor(xs).astype(jnp.int32)
    y1 = jnp.clip(y0 + 1, 0, hi - 1)
    x1 = jnp.clip(x0 + 1, 0, wi - 1)
    wy = (ys - y0)[None, None, :, None]
    wx = (xs - x0)[None, None, None, :]
    g = lambda yi, xi: x[:, :, yi[:, None], xi[None, :]]
    top = g(y0, x0) * (1.0 - wx) + g(y0, x1) * wx
    bot = g(y1, x0) * (1.0 - wx) + g(y1, x1) * wx
    return top * (1.0 - wy) + bot * wy


def dfr_forward(inputs, backbone_key, ae_params, resize=(32, 32)):
    """Eval-mode DFR.forward: inputs NCHW float32 -> anomaly map (N, *resize)."""
    x = (inputs - IMAGENET_MEAN.reshape(1, 3, 1, 1)) / IMAGENET_STD.reshape(1, 3, 1, 1)
    features = synthetic_backbone(x, backbone_key)
    resized = [nearest_resize(f, resize) for f in features[:-1]]
    resized = jnp.concatenate(resized, axis=1)                     # (N, C0, H, W)
    n, c0, h, w = resized.shape
    # AvgPool2d(kernel=4, stride=4)
    pooled = resized.reshape(n, c0, h // 4, 4, w // 4, 4).mean(axis=(3, 5))
    hp, wp = h // 4, w // 4
    # channels-first 2-D slab for the kernel: (C0, N*Hp*Wp), pixels on lanes
    feats2d = pooled.transpose(1, 0, 2, 3).reshape(c0, n * hp * wp)
    amap = run_autoencoder_anomaly(feats2d, ae_params)             # (N*Hp*Wp,)
    amap = amap.reshape(n, 1, hp, wp)
    amap = bilinear_resize_align_corners(amap, resize)             # (N, 1, H, W)
    return amap[:, 0]


if __name__ == "__main__":
    key = jax.random.PRNGKey(0)
    k_inp, k_bb, k_ae = jax.random.split(key, 3)

    resize = (32, 32)
    inputs = jax.random.uniform(k_inp, (2, 3, 32, 32), jnp.float32)

    channels = (16, 32, 64, 128)          # synthetic backbone feature channels
    c0 = sum(channels[:-1])               # 112, like DFR.c0
    cd = 40                               # DFR default latent dim (PCA init skipped)
    ae_params = init_featcae_params(k_ae, c0, cd)

    out = jax.block_until_ready(dfr_forward(inputs, k_bb, ae_params, resize))
    assert out.shape == (2, 32, 32) and out.dtype == jnp.float32
    print("KERNEL_OK")
</pallas_src>

<mosaic_0001>
module attributes {stable_mosaic.version = 11 : i64} {
  func.func @kernel(%arg0: i32, %arg1: memref<112x128xf32, #tpu.memory_space<vmem>>, %arg2: memref<96x112xbf16, #tpu.memory_space<vmem>>, %arg3: memref<96x1xf32, #tpu.memory_space<vmem>>, %arg4: memref<80x96xbf16, #tpu.memory_space<vmem>>, %arg5: memref<80x1xf32, #tpu.memory_space<vmem>>, %arg6: memref<40x80xbf16, #tpu.memory_space<vmem>>, %arg7: memref<40x1xf32, #tpu.memory_space<vmem>>, %arg8: memref<80x40xbf16, #tpu.memory_space<vmem>>, %arg9: memref<80x1xf32, #tpu.memory_space<vmem>>, %arg10: memref<96x80xbf16, #tpu.memory_space<vmem>>, %arg11: memref<96x1xf32, #tpu.memory_space<vmem>>, %arg12: memref<112x96xbf16, #tpu.memory_space<vmem>>, %arg13: memref<112x1xf32, #tpu.memory_space<vmem>>, %arg14: memref<1x128xf32, #tpu.memory_space<vmem>>) attributes {dimension_semantics = [#tpu.dimension_semantics<parallel>], iteration_bounds = array<i64: 1>, scalar_prefetch = 0 : i64, scratch_operands = 0 : i64, tpu.core_type = #tpu.core_type<tc>, window_params = [{transform_indices = @transform_0, window_bounds = array<i64: 112, 128>}, {pipeline_mode = #tpu.pipeline_mode<synchronous>, transform_indices = @transform_1, window_bounds = array<i64: 96, 112>}, {pipeline_mode = #tpu.pipeline_mode<synchronous>, transform_indices = @transform_2, window_bounds = array<i64: 96, 1>}, {pipeline_mode = #tpu.pipeline_mode<synchronous>, transform_indices = @transform_3, window_bounds = array<i64: 80, 96>}, {pipeline_mode = #tpu.pipeline_mode<synchronous>, transform_indices = @transform_4, window_bounds = array<i64: 80, 1>}, {pipeline_mode = #tpu.pipeline_mode<synchronous>, transform_indices = @transform_5, window_bounds = array<i64: 40, 80>}, {pipeline_mode = #tpu.pipeline_mode<synchronous>, transform_indices = @transform_6, window_bounds = array<i64: 40, 1>}, {pipeline_mode = #tpu.pipeline_mode<synchronous>, transform_indices = @transform_7, window_bounds = array<i64: 80, 40>}, {pipeline_mode = #tpu.pipeline_mode<synchronous>, transform_indices = @transform_8, window_bounds = array<i64: 80, 1>}, {pipeline_mode = #tpu.pipeline_mode<synchronous>, transform_indices = @transform_9, window_bounds = array<i64: 96, 80>}, {pipeline_mode = #tpu.pipeline_mode<synchronous>, transform_indices = @transform_10, window_bounds = array<i64: 96, 1>}, {pipeline_mode = #tpu.pipeline_mode<synchronous>, transform_indices = @transform_11, window_bounds = array<i64: 112, 96>}, {pipeline_mode = #tpu.pipeline_mode<synchronous>, transform_indices = @transform_12, window_bounds = array<i64: 112, 1>}, {transform_indices = @transform_13, window_bounds = array<i64: 1, 128>}]} {
    %c0 = arith.constant 0 : index
    %c0_0 = arith.constant 0 : index
    %0 = vector.load %arg1[%c0, %c0_0] : memref<112x128xf32, #tpu.memory_space<vmem>>, vector<112x128xf32>
    %1 = arith.truncf %0 : vector<112x128xf32> to vector<112x128xbf16>
    %c0_1 = arith.constant 0 : index
    %c0_2 = arith.constant 0 : index
    %2 = vector.load %arg2[%c0_1, %c0_2] : memref<96x112xbf16, #tpu.memory_space<vmem>>, vector<96x112xbf16>
    %cst = arith.constant dense<0.000000e+00> : vector<96x128xf32>
    %3 = tpu.matmul %2, %1, %cst {dimension_numbers = #tpu.dot_dimension_numbers<[1], [0], [0], [1], [0, 0, 1, 1], [], []>} : vector<96x112xbf16>, vector<112x128xbf16>, vector<96x128xf32> -> vector<96x128xf32>
    %c0_3 = arith.constant 0 : index
    %c0_4 = arith.constant 0 : index
    %4 = vector.load %arg3[%c0_3, %c0_4] : memref<96x1xf32, #tpu.memory_space<vmem>>, vector<96x1xf32>
    %5 = vector.broadcast %4 : vector<96x1xf32> to vector<96x128xf32>
    %6 = arith.addf %3, %5 : vector<96x128xf32>
    %cst_5 = arith.constant 0.000000e+00 : f32
    %7 = vector.broadcast %cst_5 : f32 to vector<96x128xf32>
    %8 = arith.maximumf %6, %7 : vector<96x128xf32>
    %9 = arith.truncf %8 : vector<96x128xf32> to vector<96x128xbf16>
    %c0_6 = arith.constant 0 : index
    %c0_7 = arith.constant 0 : index
    %10 = vector.load %arg4[%c0_6, %c0_7] : memref<80x96xbf16, #tpu.memory_space<vmem>>, vector<80x96xbf16>
    %cst_8 = arith.constant dense<0.000000e+00> : vector<80x128xf32>
    %11 = tpu.matmul %10, %9, %cst_8 {dimension_numbers = #tpu.dot_dimension_numbers<[1], [0], [0], [1], [0, 0, 1, 1], [], []>} : vector<80x96xbf16>, vector<96x128xbf16>, vector<80x128xf32> -> vector<80x128xf32>
    %c0_9 = arith.constant 0 : index
    %c0_10 = arith.constant 0 : index
    %12 = vector.load %arg5[%c0_9, %c0_10] : memref<80x1xf32, #tpu.memory_space<vmem>>, vector<80x1xf32>
    %13 = vector.broadcast %12 : vector<80x1xf32> to vector<80x128xf32>
    %14 = arith.addf %11, %13 : vector<80x128xf32>
    %cst_11 = arith.constant 0.000000e+00 : f32
    %15 = vector.broadcast %cst_11 : f32 to vector<80x128xf32>
    %16 = arith.maximumf %14, %15 : vector<80x128xf32>
    %17 = arith.truncf %16 : vector<80x128xf32> to vector<80x128xbf16>
    %c0_12 = arith.constant 0 : index
    %c0_13 = arith.constant 0 : index
    %18 = vector.load %arg6[%c0_12, %c0_13] : memref<40x80xbf16, #tpu.memory_space<vmem>>, vector<40x80xbf16>
    %cst_14 = arith.constant dense<0.000000e+00> : vector<40x128xf32>
    %19 = tpu.matmul %18, %17, %cst_14 {dimension_numbers = #tpu.dot_dimension_numbers<[1], [0], [0], [1], [0, 0, 1, 1], [], []>} : vector<40x80xbf16>, vector<80x128xbf16>, vector<40x128xf32> -> vector<40x128xf32>
    %c0_15 = arith.constant 0 : index
    %c0_16 = arith.constant 0 : index
    %20 = vector.load %arg7[%c0_15, %c0_16] : memref<40x1xf32, #tpu.memory_space<vmem>>, vector<40x1xf32>
    %21 = vector.broadcast %20 : vector<40x1xf32> to vector<40x128xf32>
    %22 = arith.addf %19, %21 : vector<40x128xf32>
    %23 = arith.truncf %22 : vector<40x128xf32> to vector<40x128xbf16>
    %c0_17 = arith.constant 0 : index
    %c0_18 = arith.constant 0 : index
    %24 = vector.load %arg8[%c0_17, %c0_18] : memref<80x40xbf16, #tpu.memory_space<vmem>>, vector<80x40xbf16>
    %cst_19 = arith.constant dense<0.000000e+00> : vector<80x128xf32>
    %25 = tpu.matmul %24, %23, %cst_19 {dimension_numbers = #tpu.dot_dimension_numbers<[1], [0], [0], [1], [0, 0, 1, 1], [], []>} : vector<80x40xbf16>, vector<40x128xbf16>, vector<80x128xf32> -> vector<80x128xf32>
    %c0_20 = arith.constant 0 : index
    %c0_21 = arith.constant 0 : index
    %26 = vector.load %arg9[%c0_20, %c0_21] : memref<80x1xf32, #tpu.memory_space<vmem>>, vector<80x1xf32>
    %27 = vector.broadcast %26 : vector<80x1xf32> to vector<80x128xf32>
    %28 = arith.addf %25, %27 : vector<80x128xf32>
    %cst_22 = arith.constant 0.000000e+00 : f32
    %29 = vector.broadcast %cst_22 : f32 to vector<80x128xf32>
    %30 = arith.maximumf %28, %29 : vector<80x128xf32>
    %31 = arith.truncf %30 : vector<80x128xf32> to vector<80x128xbf16>
    %c0_23 = arith.constant 0 : index
    %c0_24 = arith.constant 0 : index
    %32 = vector.load %arg10[%c0_23, %c0_24] : memref<96x80xbf16, #tpu.memory_space<vmem>>, vector<96x80xbf16>
    %cst_25 = arith.constant dense<0.000000e+00> : vector<96x128xf32>
    %33 = tpu.matmul %32, %31, %cst_25 {dimension_numbers = #tpu.dot_dimension_numbers<[1], [0], [0], [1], [0, 0, 1, 1], [], []>} : vector<96x80xbf16>, vector<80x128xbf16>, vector<96x128xf32> -> vector<96x128xf32>
    %c0_26 = arith.constant 0 : index
    %c0_27 = arith.constant 0 : index
    %34 = vector.load %arg11[%c0_26, %c0_27] : memref<96x1xf32, #tpu.memory_space<vmem>>, vector<96x1xf32>
    %35 = vector.broadcast %34 : vector<96x1xf32> to vector<96x128xf32>
    %36 = arith.addf %33, %35 : vector<96x128xf32>
    %cst_28 = arith.constant 0.000000e+00 : f32
    %37 = vector.broadcast %cst_28 : f32 to vector<96x128xf32>
    %38 = arith.maximumf %36, %37 : vector<96x128xf32>
    %39 = arith.truncf %38 : vector<96x128xf32> to vector<96x128xbf16>
    %c0_29 = arith.constant 0 : index
    %c0_30 = arith.constant 0 : index
    %40 = vector.load %arg12[%c0_29, %c0_30] : memref<112x96xbf16, #tpu.memory_space<vmem>>, vector<112x96xbf16>
    %cst_31 = arith.constant dense<0.000000e+00> : vector<112x128xf32>
    %41 = tpu.matmul %40, %39, %cst_31 {dimension_numbers = #tpu.dot_dimension_numbers<[1], [0], [0], [1], [0, 0, 1, 1], [], []>} : vector<112x96xbf16>, vector<96x128xbf16>, vector<112x128xf32> -> vector<112x128xf32>
    %c0_32 = arith.constant 0 : index
    %c0_33 = arith.constant 0 : index
    %42 = vector.load %arg13[%c0_32, %c0_33] : memref<112x1xf32, #tpu.memory_space<vmem>>, vector<112x1xf32>
    %43 = vector.broadcast %42 : vector<112x1xf32> to vector<112x128xf32>
    %44 = arith.addf %41, %43 : vector<112x128xf32>
    %cst_34 = arith.constant 0.000000e+00 : f32
    %45 = vector.broadcast %cst_34 : f32 to vector<1x128xf32>
    %46 = vector.extract_strided_slice %44 {offsets = [0, 0], sizes = [8, 128], strides = [1, 1]} : vector<112x128xf32> to vector<8x128xf32>
    %47 = vector.extract_strided_slice %0 {offsets = [0, 0], sizes = [8, 128], strides = [1, 1]} : vector<112x128xf32> to vector<8x128xf32>
    %48 = arith.subf %46, %47 : vector<8x128xf32>
    %49 = arith.mulf %48, %48 : vector<8x128xf32>
    %cst_35 = arith.constant dense<0.000000e+00> : vector<128xf32>
    %50 = vector.multi_reduction <add>, %49, %cst_35 [0] : vector<8x128xf32> to vector<128xf32>
    %51 = vector.shape_cast %50 : vector<128xf32> to vector<1x128xf32>
    %52 = arith.addf %45, %51 : vector<1x128xf32>
    %53 = vector.extract_strided_slice %44 {offsets = [8, 0], sizes = [8, 128], strides = [1, 1]} : vector<112x128xf32> to vector<8x128xf32>
    %54 = vector.extract_strided_slice %0 {offsets = [8, 0], sizes = [8, 128], strides = [1, 1]} : vector<112x128xf32> to vector<8x128xf32>
    %55 = arith.subf %53, %54 : vector<8x128xf32>
    %56 = arith.mulf %55, %55 : vector<8x128xf32>
    %cst_36 = arith.constant dense<0.000000e+00> : vector<128xf32>
    %57 = vector.multi_reduction <add>, %56, %cst_36 [0] : vector<8x128xf32> to vector<128xf32>
    %58 = vector.shape_cast %57 : vector<128xf32> to vector<1x128xf32>
    %59 = arith.addf %52, %58 : vector<1x128xf32>
    %60 = vector.extract_strided_slice %44 {offsets = [16, 0], sizes = [8, 128], strides = [1, 1]} : vector<112x128xf32> to vector<8x128xf32>
    %61 = vector.extract_strided_slice %0 {offsets = [16, 0], sizes = [8, 128], strides = [1, 1]} : vector<112x128xf32> to vector<8x128xf32>
    %62 = arith.subf %60, %61 : vector<8x128xf32>
    %63 = arith.mulf %62, %62 : vector<8x128xf32>
    %cst_37 = arith.constant dense<0.000000e+00> : vector<128xf32>
    %64 = vector.multi_reduction <add>, %63, %cst_37 [0] : vector<8x128xf32> to vector<128xf32>
    %65 = vector.shape_cast %64 : vector<128xf32> to vector<1x128xf32>
    %66 = arith.addf %59, %65 : vector<1x128xf32>
    %67 = vector.extract_strided_slice %44 {offsets = [24, 0], sizes = [8, 128], strides = [1, 1]} : vector<112x128xf32> to vector<8x128xf32>
    %68 = vector.extract_strided_slice %0 {offsets = [24, 0], sizes = [8, 128], strides = [1, 1]} : vector<112x128xf32> to vector<8x128xf32>
    %69 = arith.subf %67, %68 : vector<8x128xf32>
    %70 = arith.mulf %69, %69 : vector<8x128xf32>
    %cst_38 = arith.constant dense<0.000000e+00> : vector<128xf32>
    %71 = vector.multi_reduction <add>, %70, %cst_38 [0] : vector<8x128xf32> to vector<128xf32>
    %72 = vector.shape_cast %71 : vector<128xf32> to vector<1x128xf32>
    %73 = arith.addf %66, %72 : vector<1x128xf32>
    %74 = vector.extract_strided_slice %44 {offsets = [32, 0], sizes = [8, 128], strides = [1, 1]} : vector<112x128xf32> to vector<8x128xf32>
    %75 = vector.extract_strided_slice %0 {offsets = [32, 0], sizes = [8, 128], strides = [1, 1]} : vector<112x128xf32> to vector<8x128xf32>
    %76 = arith.subf %74, %75 : vector<8x128xf32>
    %77 = arith.mulf %76, %76 : vector<8x128xf32>
    %cst_39 = arith.constant dense<0.000000e+00> : vector<128xf32>
    %78 = vector.multi_reduction <add>, %77, %cst_39 [0] : vector<8x128xf32> to vector<128xf32>
    %79 = vector.shape_cast %78 : vector<128xf32> to vector<1x128xf32>
    %80 = arith.addf %73, %79 : vector<1x128xf32>
    %81 = vector.extract_strided_slice %44 {offsets = [40, 0], sizes = [8, 128], strides = [1, 1]} : vector<112x128xf32> to vector<8x128xf32>
    %82 = vector.extract_strided_slice %0 {offsets = [40, 0], sizes = [8, 128], strides = [1, 1]} : vector<112x128xf32> to vector<8x128xf32>
    %83 = arith.subf %81, %82 : vector<8x128xf32>
    %84 = arith.mulf %83, %83 : vector<8x128xf32>
    %cst_40 = arith.constant dense<0.000000e+00> : vector<128xf32>
    %85 = vector.multi_reduction <add>, %84, %cst_40 [0] : vector<8x128xf32> to vector<128xf32>
    %86 = vector.shape_cast %85 : vector<128xf32> to vector<1x128xf32>
    %87 = arith.addf %80, %86 : vector<1x128xf32>
    %88 = vector.extract_strided_slice %44 {offsets = [48, 0], sizes = [8, 128], strides = [1, 1]} : vector<112x128xf32> to vector<8x128xf32>
    %89 = vector.extract_strided_slice %0 {offsets = [48, 0], sizes = [8, 128], strides = [1, 1]} : vector<112x128xf32> to vector<8x128xf32>
    %90 = arith.subf %88, %89 : vector<8x128xf32>
    %91 = arith.mulf %90, %90 : vector<8x128xf32>
    %cst_41 = arith.constant dense<0.000000e+00> : vector<128xf32>
    %92 = vector.multi_reduction <add>, %91, %cst_41 [0] : vector<8x128xf32> to vector<128xf32>
    %93 = vector.shape_cast %92 : vector<128xf32> to vector<1x128xf32>
    %94 = arith.addf %87, %93 : vector<1x128xf32>
    %95 = vector.extract_strided_slice %44 {offsets = [56, 0], sizes = [8, 128], strides = [1, 1]} : vector<112x128xf32> to vector<8x128xf32>
    %96 = vector.extract_strided_slice %0 {offsets = [56, 0], sizes = [8, 128], strides = [1, 1]} : vector<112x128xf32> to vector<8x128xf32>
    %97 = arith.subf %95, %96 : vector<8x128xf32>
    %98 = arith.mulf %97, %97 : vector<8x128xf32>
    %cst_42 = arith.constant dense<0.000000e+00> : vector<128xf32>
    %99 = vector.multi_reduction <add>, %98, %cst_42 [0] : vector<8x128xf32> to vector<128xf32>
    %100 = vector.shape_cast %99 : vector<128xf32> to vector<1x128xf32>
    %101 = arith.addf %94, %100 : vector<1x128xf32>
    %102 = vector.extract_strided_slice %44 {offsets = [64, 0], sizes = [8, 128], strides = [1, 1]} : vector<112x128xf32> to vector<8x128xf32>
    %103 = vector.extract_strided_slice %0 {offsets = [64, 0], sizes = [8, 128], strides = [1, 1]} : vector<112x128xf32> to vector<8x128xf32>
    %104 = arith.subf %102, %103 : vector<8x128xf32>
    %105 = arith.mulf %104, %104 : vector<8x128xf32>
    %cst_43 = arith.constant dense<0.000000e+00> : vector<128xf32>
    %106 = vector.multi_reduction <add>, %105, %cst_43 [0] : vector<8x128xf32> to vector<128xf32>
    %107 = vector.shape_cast %106 : vector<128xf32> to vector<1x128xf32>
    %108 = arith.addf %101, %107 : vector<1x128xf32>
    %109 = vector.extract_strided_slice %44 {offsets = [72, 0], sizes = [8, 128], strides = [1, 1]} : vector<112x128xf32> to vector<8x128xf32>
    %110 = vector.extract_strided_slice %0 {offsets = [72, 0], sizes = [8, 128], strides = [1, 1]} : vector<112x128xf32> to vector<8x128xf32>
    %111 = arith.subf %109, %110 : vector<8x128xf32>
    %112 = arith.mulf %111, %111 : vector<8x128xf32>
    %cst_44 = arith.constant dense<0.000000e+00> : vector<128xf32>
    %113 = vector.multi_reduction <add>, %112, %cst_44 [0] : vector<8x128xf32> to vector<128xf32>
    %114 = vector.shape_cast %113 : vector<128xf32> to vector<1x128xf32>
    %115 = arith.addf %108, %114 : vector<1x128xf32>
    %116 = vector.extract_strided_slice %44 {offsets = [80, 0], sizes = [8, 128], strides = [1, 1]} : vector<112x128xf32> to vector<8x128xf32>
    %117 = vector.extract_strided_slice %0 {offsets = [80, 0], sizes = [8, 128], strides = [1, 1]} : vector<112x128xf32> to vector<8x128xf32>
    %118 = arith.subf %116, %117 : vector<8x128xf32>
    %119 = arith.mulf %118, %118 : vector<8x128xf32>
    %cst_45 = arith.constant dense<0.000000e+00> : vector<128xf32>
    %120 = vector.multi_reduction <add>, %119, %cst_45 [0] : vector<8x128xf32> to vector<128xf32>
    %121 = vector.shape_cast %120 : vector<128xf32> to vector<1x128xf32>
    %122 = arith.addf %115, %121 : vector<1x128xf32>
    %123 = vector.extract_strided_slice %44 {offsets = [88, 0], sizes = [8, 128], strides = [1, 1]} : vector<112x128xf32> to vector<8x128xf32>
    %124 = vector.extract_strided_slice %0 {offsets = [88, 0], sizes = [8, 128], strides = [1, 1]} : vector<112x128xf32> to vector<8x128xf32>
    %125 = arith.subf %123, %124 : vector<8x128xf32>
    %126 = arith.mulf %125, %125 : vector<8x128xf32>
    %cst_46 = arith.constant dense<0.000000e+00> : vector<128xf32>
    %127 = vector.multi_reduction <add>, %126, %cst_46 [0] : vector<8x128xf32> to vector<128xf32>
    %128 = vector.shape_cast %127 : vector<128xf32> to vector<1x128xf32>
    %129 = arith.addf %122, %128 : vector<1x128xf32>
    %130 = vector.extract_strided_slice %44 {offsets = [96, 0], sizes = [8, 128], strides = [1, 1]} : vector<112x128xf32> to vector<8x128xf32>
    %131 = vector.extract_strided_slice %0 {offsets = [96, 0], sizes = [8, 128], strides = [1, 1]} : vector<112x128xf32> to vector<8x128xf32>
    %132 = arith.subf %130, %131 : vector<8x128xf32>
    %133 = arith.mulf %132, %132 : vector<8x128xf32>
    %cst_47 = arith.constant dense<0.000000e+00> : vector<128xf32>
    %134 = vector.multi_reduction <add>, %133, %cst_47 [0] : vector<8x128xf32> to vector<128xf32>
    %135 = vector.shape_cast %134 : vector<128xf32> to vector<1x128xf32>
    %136 = arith.addf %129, %135 : vector<1x128xf32>
    %137 = vector.extract_strided_slice %44 {offsets = [104, 0], sizes = [8, 128], strides = [1, 1]} : vector<112x128xf32> to vector<8x128xf32>
    %138 = vector.extract_strided_slice %0 {offsets = [104, 0], sizes = [8, 128], strides = [1, 1]} : vector<112x128xf32> to vector<8x128xf32>
    %139 = arith.subf %137, %138 : vector<8x128xf32>
    %140 = arith.mulf %139, %139 : vector<8x128xf32>
    %cst_48 = arith.constant dense<0.000000e+00> : vector<128xf32>
    %141 = vector.multi_reduction <add>, %140, %cst_48 [0] : vector<8x128xf32> to vector<128xf32>
    %142 = vector.shape_cast %141 : vector<128xf32> to vector<1x128xf32>
    %143 = arith.addf %136, %142 : vector<1x128xf32>
    %cst_49 = arith.constant 0.00892857183 : f32
    %144 = vector.broadcast %cst_49 : f32 to vector<1x128xf32>
    %145 = arith.mulf %143, %144 : vector<1x128xf32>
    %c0_50 = arith.constant 0 : index
    %c0_51 = arith.constant 0 : index
    %146 = vector.load %arg14[%c0_50, %c0_51] : memref<1x128xf32, #tpu.memory_space<vmem>>, vector<1x128xf32>
    tpu.vector_store %arg14[%c0_50, %c0_51], %145 {strides = array<i32>} : memref<1x128xf32, #tpu.memory_space<vmem>>, vector<1x128xf32>,
    return
  }
  func.func @transform_0(%arg0: i32) -> (i32, i32) {
    %c0_i32 = arith.constant 0 : i32
    %c0_i32_0 = arith.constant 0 : i32
    return %c0_i32, %arg0 : i32, i32
  }
  func.func @transform_1(%arg0: i32) -> (i32, i32) {
    %c0_i32 = arith.constant 0 : i32
    %c0_i32_0 = arith.constant 0 : i32
    %c0_i32_1 = arith.constant 0 : i32
    return %c0_i32, %c0_i32_0 : i32, i32
  }
  func.func @transform_2(%arg0: i32) -> (i32, i32) {
    %c0_i32 = arith.constant 0 : i32
    %c0_i32_0 = arith.constant 0 : i32
    %c0_i32_1 = arith.constant 0 : i32
    return %c0_i32, %c0_i32_0 : i32, i32
  }
  func.func @transform_3(%arg0: i32) -> (i32, i32) {
    %c0_i32 = arith.constant 0 : i32
    %c0_i32_0 = arith.constant 0 : i32
    %c0_i32_1 = arith.constant 0 : i32
    return %c0_i32, %c0_i32_0 : i32, i32
  }
  func.func @transform_4(%arg0: i32) -> (i32, i32) {
    %c0_i32 = arith.constant 0 : i32
    %c0_i32_0 = arith.constant 0 : i32
    %c0_i32_1 = arith.constant 0 : i32
    return %c0_i32, %c0_i32_0 : i32, i32
  }
  func.func @transform_5(%arg0: i32) -> (i32, i32) {
    %c0_i32 = arith.constant 0 : i32
    %c0_i32_0 = arith.constant 0 : i32
    %c0_i32_1 = arith.constant 0 : i32
    return %c0_i32, %c0_i32_0 : i32, i32
  }
  func.func @transform_6(%arg0: i32) -> (i32, i32) {
    %c0_i32 = arith.constant 0 : i32
    %c0_i32_0 = arith.constant 0 : i32
    %c0_i32_1 = arith.constant 0 : i32
    return %c0_i32, %c0_i32_0 : i32, i32
  }
  func.func @transform_7(%arg0: i32) -> (i32, i32) {
    %c0_i32 = arith.constant 0 : i32
    %c0_i32_0 = arith.constant 0 : i32
    %c0_i32_1 = arith.constant 0 : i32
    return %c0_i32, %c0_i32_0 : i32, i32
  }
  func.func @transform_8(%arg0: i32) -> (i32, i32) {
    %c0_i32 = arith.constant 0 : i32
    %c0_i32_0 = arith.constant 0 : i32
    %c0_i32_1 = arith.constant 0 : i32
    return %c0_i32, %c0_i32_0 : i32, i32
  }
  func.func @transform_9(%arg0: i32) -> (i32, i32) {
    %c0_i32 = arith.constant 0 : i32
    %c0_i32_0 = arith.constant 0 : i32
    %c0_i32_1 = arith.constant 0 : i32
    return %c0_i32, %c0_i32_0 : i32, i32
  }
  func.func @transform_10(%arg0: i32) -> (i32, i32) {
    %c0_i32 = arith.constant 0 : i32
    %c0_i32_0 = arith.constant 0 : i32
    %c0_i32_1 = arith.constant 0 : i32
    return %c0_i32, %c0_i32_0 : i32, i32
  }
  func.func @transform_11(%arg0: i32) -> (i32, i32) {
    %c0_i32 = arith.constant 0 : i32
    %c0_i32_0 = arith.constant 0 : i32
    %c0_i32_1 = arith.constant 0 : i32
    return %c0_i32, %c0_i32_0 : i32, i32
  }
  func.func @transform_12(%arg0: i32) -> (i32, i32) {
    %c0_i32 = arith.constant 0 : i32
    %c0_i32_0 = arith.constant 0 : i32
    %c0_i32_1 = arith.constant 0 : i32
    return %c0_i32, %c0_i32_0 : i32, i32
  }
  func.func @transform_13(%arg0: i32) -> (i32, i32) {
    %c0_i32 = arith.constant 0 : i32
    %c0_i32_0 = arith.constant 0 : i32
    return %arg0, %c0_i32 : i32, i32
  }
}

</mosaic_0001>

<llo_original>
// kernel: tpu_custom_call.1
$region0: #{tpu_custom_call.1}
  #allocation0 [shape = 'u32[]', space=smem, size = 0x4, offset = 0x4, fixed_abs, tag = 'smem constant byte address 0x4 - core index']
  #allocation1 [shape = 'u32[144,128]{1,0:T(1,128)}', space=vmem, size = 0x12000, scoped, tag = 'internal scratch']
  %s0 = inlined_call_operand.vmem [shape: f32[112,128], index: 0, kind: input, shape index: {}]
  %s1 = inlined_call_operand.vmem [shape: bf16[96,112], index: 1, kind: input, shape index: {}]
  %s2 = inlined_call_operand.vmem [shape: f32[96,1], index: 2, kind: input, shape index: {}]
  %s3 = inlined_call_operand.vmem [shape: bf16[80,96], index: 3, kind: input, shape index: {}]
  %s4 = inlined_call_operand.vmem [shape: f32[80,1], index: 4, kind: input, shape index: {}]
  %s5 = inlined_call_operand.vmem [shape: bf16[40,80], index: 5, kind: input, shape index: {}]
  %s6 = inlined_call_operand.vmem [shape: f32[40,1], index: 6, kind: input, shape index: {}]
  %s7 = inlined_call_operand.vmem [shape: bf16[80,40], index: 7, kind: input, shape index: {}]
  %s8 = inlined_call_operand.vmem [shape: f32[80,1], index: 8, kind: input, shape index: {}]
  %s9 = inlined_call_operand.vmem [shape: bf16[96,80], index: 9, kind: input, shape index: {}]
  %s10 = inlined_call_operand.vmem [shape: f32[96,1], index: 10, kind: input, shape index: {}]
  %s11 = inlined_call_operand.vmem [shape: bf16[112,96], index: 11, kind: input, shape index: {}]
  %s12 = inlined_call_operand.vmem [shape: f32[112,1], index: 12, kind: input, shape index: {}]
  %s13 = inlined_call_operand.hbm [shape: f32[1,128], index: 13, kind: output, shape index: {}]
  %s14 = sld [smem:[#allocation0]]
  $region62: #{tpu_custom_call.1} parent=0
    _
  %s16 = ssub.s32 1, %s14
  %s17 = scalar_select 0, %s16, %s14
  $region1: #{tpu_custom_call.1} parent=0
    #allocation2 [shape = 'u8[512]{0}', space=vmem, size = 0x400, scoped, tag = 'output window, operand 0, single buffered']
    #allocation3 [shape = 's32[1]{0}', space=sflag, size = 0x4, scoped, tag = 'scoped memory for tpu_custom_call.1']
    %18 = vsyncpa [#allocation3], 0
    // Predicated region
    $region2: #{tpu_custom_call.1} parent=1 // pred_check
      _
    $region3: #{tpu_custom_call.1} parent=1 // pred_check_branch
      %20 = sbr.rel (0) target = $region5
    $region4: #{tpu_custom_call.1} parent=1 // pred_region
      _
    $region5: #{tpu_custom_call.1} parent=1 // pred_fallthru
      _
    // Predicated region
    $region6: #{tpu_custom_call.1} parent=1 // pred_check
      _
    $region7: #{tpu_custom_call.1} parent=1 // pred_check_branch
      %22 = sbr.rel (0) target = $region9
    $region8: #{tpu_custom_call.1} parent=1 // pred_region
      _
    $region9: #{tpu_custom_call.1} parent=1 // pred_fallthru
      _
    // Predicated region
    $region10: #{tpu_custom_call.1} parent=1 // pred_check
      _
    $region11: #{tpu_custom_call.1} parent=1 // pred_check_branch
      %24 = sbr.rel (0) target = $region13
    $region12: #{tpu_custom_call.1} parent=1 // pred_region
      _
    $region13: #{tpu_custom_call.1} parent=1 // pred_fallthru
      _
    // Predicated region
    $region14: #{tpu_custom_call.1} parent=1 // pred_check
      _
    $region15: #{tpu_custom_call.1} parent=1 // pred_check_branch
      %26 = sbr.rel (0) target = $region17
    $region16: #{tpu_custom_call.1} parent=1 // pred_region
      _
    $region17: #{tpu_custom_call.1} parent=1 // pred_fallthru
      _
    // Predicated region
    $region18: #{tpu_custom_call.1} parent=1 // pred_check
      _
    $region19: #{tpu_custom_call.1} parent=1 // pred_check_branch
      %28 = sbr.rel (0) target = $region21
    $region20: #{tpu_custom_call.1} parent=1 // pred_region
      _
    $region21: #{tpu_custom_call.1} parent=1 // pred_fallthru
      _
    // Predicated region
    $region22: #{tpu_custom_call.1} parent=1 // pred_check
      _
    $region23: #{tpu_custom_call.1} parent=1 // pred_check_branch
      %30 = sbr.rel (0) target = $region25
    $region24: #{tpu_custom_call.1} parent=1 // pred_region
      _
    $region25: #{tpu_custom_call.1} parent=1 // pred_fallthru
      _
    // Predicated region
    $region26: #{tpu_custom_call.1} parent=1 // pred_check
      _
    $region27: #{tpu_custom_call.1} parent=1 // pred_check_branch
      %32 = sbr.rel (0) target = $region29
    $region28: #{tpu_custom_call.1} parent=1 // pred_region
      _
    $region29: #{tpu_custom_call.1} parent=1 // pred_fallthru
      _
    // Predicated region
    $region30: #{tpu_custom_call.1} parent=1 // pred_check
      _
    $region31: #{tpu_custom_call.1} parent=1 // pred_check_branch
      %34 = sbr.rel (0) target = $region33
    $region32: #{tpu_custom_call.1} parent=1 // pred_region
      _
    $region33: #{tpu_custom_call.1} parent=1 // pred_fallthru
      _
    // Predicated region
    $region34: #{tpu_custom_call.1} parent=1 // pred_check
      _
    $region35: #{tpu_custom_call.1} parent=1 // pred_check_branch
      %36 = sbr.rel (0) target = $region37
    $region36: #{tpu_custom_call.1} parent=1 // pred_region
      _
    $region37: #{tpu_custom_call.1} parent=1 // pred_fallthru
      _
    // Predicated region
    $region38: #{tpu_custom_call.1} parent=1 // pred_check
      _
    $region39: #{tpu_custom_call.1} parent=1 // pred_check_branch
      %38 = sbr.rel (0) target = $region41
    $region40: #{tpu_custom_call.1} parent=1 // pred_region
      _
    $region41: #{tpu_custom_call.1} parent=1 // pred_fallthru
      _
    // Predicated region
    $region42: #{tpu_custom_call.1} parent=1 // pred_check
      _
    $region43: #{tpu_custom_call.1} parent=1 // pred_check_branch
      %40 = sbr.rel (0) target = $region45
    $region44: #{tpu_custom_call.1} parent=1 // pred_region
      _
    $region45: #{tpu_custom_call.1} parent=1 // pred_fallthru
      _
    // Predicated region
    $region46: #{tpu_custom_call.1} parent=1 // pred_check
      _
    $region47: #{tpu_custom_call.1} parent=1 // pred_check_branch
      %42 = sbr.rel (0) target = $region49
    $region48: #{tpu_custom_call.1} parent=1 // pred_region
      _
    $region49: #{tpu_custom_call.1} parent=1 // pred_fallthru
      _
    // Predicated region
    $region50: #{tpu_custom_call.1} parent=1 // pred_check
      _
    $region51: #{tpu_custom_call.1} parent=1 // pred_check_branch
      %44 = sbr.rel (0) target = $region53
    $region52: #{tpu_custom_call.1} parent=1 // pred_region
      _
    $region53: #{tpu_custom_call.1} parent=1 // pred_fallthru
      _
    %v46 = vld [vmem:[%s0] sm:$0xff]
    %v47 = vld [vmem:[%s0 + $0x8] sm:$0xff]
    %v48 = vld [vmem:[%s0 + $0x10] sm:$0xff]
    %v49 = vld [vmem:[%s0 + $0x18] sm:$0xff]
    %v50 = vld [vmem:[%s0 + $0x20] sm:$0xff]
    %v51 = vld [vmem:[%s0 + $0x28] sm:$0xff]
    %v52 = vld [vmem:[%s0 + $0x30] sm:$0xff]
    %v53 = vld [vmem:[%s0 + $0x38] sm:$0xff]
    %v54 = vld [vmem:[%s0 + $0x40] sm:$0xff]
    %v55 = vld [vmem:[%s0 + $0x48] sm:$0xff]
    %v56 = vld [vmem:[%s0 + $0x50] sm:$0xff]
    %v57 = vld [vmem:[%s0 + $0x58] sm:$0xff]
    %v58 = vld [vmem:[%s0 + $0x60] sm:$0xff]
    %v59 = vld [vmem:[%s0 + $0x68] sm:$0xff]
    %v60 = vpack.c.bf16 %v47, %v46
    %v61 = vpack.c.bf16 %v49, %v48
    %v62 = vpack.c.bf16 %v51, %v50
    %v63 = vpack.c.bf16 %v53, %v52
    %v64 = vpack.c.bf16 %v55, %v54
    %v65 = vpack.c.bf16 %v57, %v56
    %v66 = vpack.c.bf16 %v59, %v58
    %v67 = vld [vmem:[%s1] sm:$0xf]
    %v68 = vld [vmem:[%s1 + $0x4] sm:$0xf]
    %v69 = vld [vmem:[%s1 + $0x8] sm:$0xf]
    %v70 = vld [vmem:[%s1 + $0xc] sm:$0xf]
    %v71 = vld [vmem:[%s1 + $0x10] sm:$0xf]
    %v72 = vld [vmem:[%s1 + $0x14] sm:$0xf]
    %v73 = vld [vmem:[%s1 + $0x18] sm:$0xf]
    %v74 = vld [vmem:[%s1 + $0x1c] sm:$0xf]
    %v75 = vld [vmem:[%s1 + $0x20] sm:$0xf]
    %v76 = vld [vmem:[%s1 + $0x24] sm:$0xf]
    %v77 = vld [vmem:[%s1 + $0x28] sm:$0xf]
    %v78 = vld [vmem:[%s1 + $0x2c] sm:$0xf]
    %v79 = vld [vmem:[%s2] sm:$0xff]
    %v80 = vld [vmem:[%s2 + $0x8] sm:$0xff]
    %v81 = vld [vmem:[%s2 + $0x10] sm:$0xff]
    %v82 = vld [vmem:[%s2 + $0x18] sm:$0xff]
    %v83 = vld [vmem:[%s2 + $0x20] sm:$0xff]
    %v84 = vld [vmem:[%s2 + $0x28] sm:$0xff]
    %v85 = vld [vmem:[%s2 + $0x30] sm:$0xff]
    %v86 = vld [vmem:[%s2 + $0x38] sm:$0xff]
    %v87 = vld [vmem:[%s2 + $0x40] sm:$0xff]
    %v88 = vld [vmem:[%s2 + $0x48] sm:$0xff]
    %v89 = vld [vmem:[%s2 + $0x50] sm:$0xff]
    %v90 = vld [vmem:[%s2 + $0x58] sm:$0xff]
    %92 = vset.pattern.permute.xlu0 0
    %93 = vperm.xlu0 %92, %v79
    %v94 = vpop.permute.xlu0 %93
    %97 = vset.pattern.permute.xlu0 0
    %98 = vperm.xlu0 %97, %v80
    %v99 = vpop.permute.xlu0 %98
    %102 = vset.pattern.permute.xlu0 0
    %103 = vperm.xlu0 %102, %v81
    %v104 = vpop.permute.xlu0 %103
    %107 = vset.pattern.permute.xlu0 0
    %108 = vperm.xlu0 %107, %v82
    %v109 = vpop.permute.xlu0 %108
    %112 = vset.pattern.permute.xlu0 0
    %113 = vperm.xlu0 %112, %v83
    %v114 = vpop.permute.xlu0 %113
    %117 = vset.pattern.permute.xlu0 0
    %118 = vperm.xlu0 %117, %v84
    %v119 = vpop.permute.xlu0 %118
    %122 = vset.pattern.permute.xlu0 0
    %123 = vperm.xlu0 %122, %v85
    %v124 = vpop.permute.xlu0 %123
    %127 = vset.pattern.permute.xlu0 0
    %128 = vperm.xlu0 %127, %v86
    %v129 = vpop.permute.xlu0 %128
    %132 = vset.pattern.permute.xlu0 0
    %133 = vperm.xlu0 %132, %v87
    %v134 = vpop.permute.xlu0 %133
    %137 = vset.pattern.permute.xlu0 0
    %138 = vperm.xlu0 %137, %v88
    %v139 = vpop.permute.xlu0 %138
    %142 = vset.pattern.permute.xlu0 0
    %143 = vperm.xlu0 %142, %v89
    %v144 = vpop.permute.xlu0 %143
    %147 = vset.pattern.permute.xlu0 0
    %148 = vperm.xlu0 %147, %v90
    %v149 = vpop.permute.xlu0 %148
    %v163 = vunpack.c.l.b16 %v67
    %v164 = vunpack.c.l.b16 %v68
    %v165 = vunpack.c.l.b16 %v69
    %v166 = vunpack.c.l.b16 %v70
    %v167 = vunpack.c.l.b16 %v71
    %v168 = vunpack.c.l.b16 %v72
    %v169 = vunpack.c.l.b16 %v73
    %v170 = vunpack.c.l.b16 %v74
    %v171 = vunpack.c.l.b16 %v75
    %v172 = vunpack.c.l.b16 %v76
    %v173 = vunpack.c.l.b16 %v77
    %v174 = vunpack.c.l.b16 %v78
    %v175 = vpack.c.b16 %v164, %v163
    %v176 = vpack.c.b16 %v166, %v165
    %v177 = vpack.c.b16 %v168, %v167
    %v178 = vpack.c.b16 %v170, %v169
    %v179 = vpack.c.b16 %v172, %v171
    %v180 = vpack.c.b16 %v174, %v173
    %vm181 = vcmask 916480
    %v183 = vsel %vm181, %v175, 0
    %v186 = vsel %vm181, %v176, 0
    %v189 = vsel %vm181, %v177, 0
    %v192 = vsel %vm181, %v178, 0
    %v195 = vsel %vm181, %v179, 0
    %v198 = vsel %vm181, %v180, 0
    %200 = vmatprep.subr.bf16.mxu0 0
    %201 = vmatpush1.bf16.msra.mxu0 0
    %202 = vmatprep.subr.bf16.mxu0 0
    %203 = vmatpush1.bf16.msra.mxu0 %v66
    %204 = vmatprep.subr.bf16.mxu0 0
    %205 = vmatpush1.bf16.msra.mxu0 %v65
    %206 = vmatprep.subr.bf16.mxu0 0
    %207 = vmatpush1.bf16.msra.mxu0 %v64
    %208 = vmatprep.subr.bf16.mxu0 0
    %209 = vmatpush1.bf16.msra.mxu0 %v63
    %210 = vmatprep.subr.bf16.mxu0 0
    %211 = vmatpush1.bf16.msra.mxu0 %v62
    %212 = vmatprep.subr.bf16.mxu0 0
    %213 = vmatpush1.bf16.msra.mxu0 %v61
    %214 = vmatprep.subr.bf16.mxu0 0
    %215 = vmatpush1.bf16.msra.mxu0 %v60
    %216 = vmatprep.subr.bf16.mxu0 0
    %217 = vmatpush2.bf16.msra.mxu0 0
    %218 = vmatprep.subr.bf16.mxu0 0
    %219 = vmatpush2.bf16.msra.mxu0 0
    %220 = vmatprep.subr.bf16.mxu0 0
    %221 = vmatpush2.bf16.msra.mxu0 0
    %222 = vmatprep.subr.bf16.mxu0 0
    %223 = vmatpush2.bf16.msra.mxu0 0
    %224 = vmatprep.subr.bf16.mxu0 0
    %225 = vmatpush2.bf16.msra.mxu0 0
    %226 = vmatprep.subr.bf16.mxu0 0
    %227 = vmatpush2.bf16.msra.mxu0 0
    %228 = vmatprep.subr.bf16.mxu0 0
    %229 = vmatpush2.bf16.msra.mxu0 0
    %230 = vmatprep.subr.bf16.mxu0 0
    %231 = vmatpush2.bf16.msra.mxu0 0
    %232 = vmatprep.mubr.bf16.mxu0 0
    %233 = vmatmul.mubr.bf16.gmra.mxu0 %v183
    %v234 = vpop.f32.mrf.mxu0
    %v235 = vadd.f32 %v94, %v234
    %v236 = vpop.f32.mrf.mxu0
    %v237 = vpop.f32.mrf.mxu0
    %v238 = vadd.f32 %v99, %v237
    %v239 = vpop.f32.mrf.mxu0
    %240 = vmatprep.mubr.bf16.mxu0 0
    %241 = vmatmul.mubr.bf16.gmra.mxu0 %v186
    %v242 = vpop.f32.mrf.mxu0
    %v243 = vadd.f32 %v104, %v242
    %v244 = vpop.f32.mrf.mxu0
    %v245 = vpop.f32.mrf.mxu0
    %v246 = vadd.f32 %v109, %v245
    %v247 = vpop.f32.mrf.mxu0
    %248 = vmatprep.mubr.bf16.mxu0 0
    %249 = vmatmul.mubr.bf16.gmra.mxu0 %v189
    %v250 = vpop.f32.mrf.mxu0
    %v251 = vadd.f32 %v114, %v250
    %v252 = vpop.f32.mrf.mxu0
    %v253 = vpop.f32.mrf.mxu0
    %v254 = vadd.f32 %v119, %v253
    %v255 = vpop.f32.mrf.mxu0
    %256 = vmatprep.mubr.bf16.mxu0 0
    %257 = vmatmul.mubr.bf16.gmra.mxu0 %v192
    %v258 = vpop.f32.mrf.mxu0
    %v259 = vadd.f32 %v124, %v258
    %v260 = vpop.f32.mrf.mxu0
    %v261 = vpop.f32.mrf.mxu0
    %v262 = vadd.f32 %v129, %v261
    %v263 = vpop.f32.mrf.mxu0
    %264 = vmatprep.mubr.bf16.mxu0 0
    %265 = vmatmul.mubr.bf16.gmra.mxu0 %v195
    %v266 = vpop.f32.mrf.mxu0
    %v267 = vadd.f32 %v134, %v266
    %v268 = vpop.f32.mrf.mxu0
    %v269 = vpop.f32.mrf.mxu0
    %v270 = vadd.f32 %v139, %v269
    %v271 = vpop.f32.mrf.mxu0
    %272 = vmatprep.mubr.bf16.mxu0 0
    %273 = vmatmul.mubr.bf16.gmra.mxu0 %v198
    %v274 = vpop.f32.mrf.mxu0
    %v275 = vadd.f32 %v144, %v274
    %v276 = vpop.f32.mrf.mxu0
    %v277 = vpop.f32.mrf.mxu0
    %v278 = vadd.f32 %v149, %v277
    %v279 = vpop.f32.mrf.mxu0
    %280 = vdwg.mxu0
    %v281 = vmax.f32 %v235, 0.0
    %v282 = vmax.f32 %v238, 0.0
    %v283 = vmax.f32 %v243, 0.0
    %v284 = vmax.f32 %v246, 0.0
    %v285 = vmax.f32 %v251, 0.0
    %v286 = vmax.f32 %v254, 0.0
    %v287 = vmax.f32 %v259, 0.0
    %v288 = vmax.f32 %v262, 0.0
    %v289 = vmax.f32 %v267, 0.0
    %v290 = vmax.f32 %v270, 0.0
    %v291 = vmax.f32 %v275, 0.0
    %v292 = vmax.f32 %v278, 0.0
    %v293 = vpack.c.bf16 %v282, %v281
    %v294 = vpack.c.bf16 %v284, %v283
    %v295 = vpack.c.bf16 %v286, %v285
    %v296 = vpack.c.bf16 %v288, %v287
    %v297 = vpack.c.bf16 %v290, %v289
    %v298 = vpack.c.bf16 %v292, %v291
    %v299 = vld [vmem:[%s3] sm:$0xf]
    %v300 = vld [vmem:[%s3 + $0x4] sm:$0xf]
    %v301 = vld [vmem:[%s3 + $0x8] sm:$0xf]
    %v302 = vld [vmem:[%s3 + $0xc] sm:$0xf]
    %v303 = vld [vmem:[%s3 + $0x10] sm:$0xf]
    %v304 = vld [vmem:[%s3 + $0x14] sm:$0xf]
    %v305 = vld [vmem:[%s3 + $0x18] sm:$0xf]
    %v306 = vld [vmem:[%s3 + $0x1c] sm:$0xf]
    %v307 = vld [vmem:[%s3 + $0x20] sm:$0xf]
    %v308 = vld [vmem:[%s3 + $0x24] sm:$0xf]
    %v309 = vld [vmem:[%s4] sm:$0xff]
    %v310 = vld [vmem:[%s4 + $0x8] sm:$0xff]
    %v311 = vld [vmem:[%s4 + $0x10] sm:$0xff]
    %v312 = vld [vmem:[%s4 + $0x18] sm:$0xff]
    %v313 = vld [vmem:[%s4 + $0x20] sm:$0xff]
    %v314 = vld [vmem:[%s4 + $0x28] sm:$0xff]
    %v315 = vld [vmem:[%s4 + $0x30] sm:$0xff]
    %v316 = vld [vmem:[%s4 + $0x38] sm:$0xff]
    %v317 = vld [vmem:[%s4 + $0x40] sm:$0xff]
    %v318 = vld [vmem:[%s4 + $0x48] sm:$0xff]
    %320 = vset.pattern.permute.xlu0 0
    %321 = vperm.xlu0 %320, %v309
    %v322 = vpop.permute.xlu0 %321
    %325 = vset.pattern.permute.xlu0 0
    %326 = vperm.xlu0 %325, %v310
    %v327 = vpop.permute.xlu0 %326
    %330 = vset.pattern.permute.xlu0 0
    %331 = vperm.xlu0 %330, %v311
    %v332 = vpop.permute.xlu0 %331
    %335 = vset.pattern.permute.xlu0 0
    %336 = vperm.xlu0 %335, %v312
    %v337 = vpop.permute.xlu0 %336
    %340 = vset.pattern.permute.xlu0 0
    %341 = vperm.xlu0 %340, %v313
    %v342 = vpop.permute.xlu0 %341
    %345 = vset.pattern.permute.xlu0 0
    %346 = vperm.xlu0 %345, %v314
    %v347 = vpop.permute.xlu0 %346
    %350 = vset.pattern.permute.xlu0 0
    %351 = vperm.xlu0 %350, %v315
    %v352 = vpop.permute.xlu0 %351
    %355 = vset.pattern.permute.xlu0 0
    %356 = vperm.xlu0 %355, %v316
    %v357 = vpop.permute.xlu0 %356
    %360 = vset.pattern.permute.xlu0 0
    %361 = vperm.xlu0 %360, %v317
    %v362 = vpop.permute.xlu0 %361
    %365 = vset.pattern.permute.xlu0 0
    %366 = vperm.xlu0 %365, %v318
    %v367 = vpop.permute.xlu0 %366
    %v379 = vunpack.c.l.b16 %v299
    %v380 = vunpack.c.l.b16 %v300
    %v381 = vunpack.c.l.b16 %v301
    %v382 = vunpack.c.l.b16 %v302
    %v383 = vunpack.c.l.b16 %v303
    %v384 = vunpack.c.l.b16 %v304
    %v385 = vunpack.c.l.b16 %v305
    %v386 = vunpack.c.l.b16 %v306
    %v387 = vunpack.c.l.b16 %v307
    %v388 = vunpack.c.l.b16 %v308
    %v389 = vpack.c.b16 %v380, %v379
    %v390 = vpack.c.b16 %v382, %v381
    %v391 = vpack.c.b16 %v384, %v383
    %v392 = vpack.c.b16 %v386, %v385
    %v393 = vpack.c.b16 %v388, %v387
    %vm394 = vcmask 785408
    %v396 = vsel %vm394, %v389, 0
    %v399 = vsel %vm394, %v390, 0
    %v402 = vsel %vm394, %v391, 0
    %v405 = vsel %vm394, %v392, 0
    %v408 = vsel %vm394, %v393, 0
    %410 = vmatprep.subr.bf16.mxu0 0
    %411 = vmatpush1.bf16.msra.mxu0 0
    %412 = vmatprep.subr.bf16.mxu0 0
    %413 = vmatpush1.bf16.msra.mxu0 0
    %414 = vmatprep.subr.bf16.mxu0 0
    %415 = vmatpush1.bf16.msra.mxu0 %v298
    %416 = vmatprep.subr.bf16.mxu0 0
    %417 = vmatpush1.bf16.msra.mxu0 %v297
    %418 = vmatprep.subr.bf16.mxu0 0
    %419 = vmatpush1.bf16.msra.mxu0 %v296
    %420 = vmatprep.subr.bf16.mxu0 0
    %421 = vmatpush1.bf16.msra.mxu0 %v295
    %422 = vmatprep.subr.bf16.mxu0 0
    %423 = vmatpush1.bf16.msra.mxu0 %v294
    %424 = vmatprep.subr.bf16.mxu0 0
    %425 = vmatpush1.bf16.msra.mxu0 %v293
    %426 = vmatprep.subr.bf16.mxu0 0
    %427 = vmatpush2.bf16.msra.mxu0 0
    %428 = vmatprep.subr.bf16.mxu0 0
    %429 = vmatpush2.bf16.msra.mxu0 0
    %430 = vmatprep.subr.bf16.mxu0 0
    %431 = vmatpush2.bf16.msra.mxu0 0
    %432 = vmatprep.subr.bf16.mxu0 0
    %433 = vmatpush2.bf16.msra.mxu0 0
    %434 = vmatprep.subr.bf16.mxu0 0
    %435 = vmatpush2.bf16.msra.mxu0 0
    %436 = vmatprep.subr.bf16.mxu0 0
    %437 = vmatpush2.bf16.msra.mxu0 0
    %438 = vmatprep.subr.bf16.mxu0 0
    %439 = vmatpush2.bf16.msra.mxu0 0
    %440 = vmatprep.subr.bf16.mxu0 0
    %441 = vmatpush2.bf16.msra.mxu0 0
    %442 = vmatprep.mubr.bf16.mxu0 0
    %443 = vmatmul.mubr.bf16.gmra.mxu0 %v396
    %v444 = vpop.f32.mrf.mxu0
    %v445 = vadd.f32 %v322, %v444
    %v446 = vpop.f32.mrf.mxu0
    %v447 = vpop.f32.mrf.mxu0
    %v448 = vadd.f32 %v327, %v447
    %v449 = vpop.f32.mrf.mxu0
    %450 = vmatprep.mubr.bf16.mxu0 0
    %451 = vmatmul.mubr.bf16.gmra.mxu0 %v399
    %v452 = vpop.f32.mrf.mxu0
    %v453 = vadd.f32 %v332, %v452
    %v454 = vpop.f32.mrf.mxu0
    %v455 = vpop.f32.mrf.mxu0
    %v456 = vadd.f32 %v337, %v455
    %v457 = vpop.f32.mrf.mxu0
    %458 = vmatprep.mubr.bf16.mxu0 0
    %459 = vmatmul.mubr.bf16.gmra.mxu0 %v402
    %v460 = vpop.f32.mrf.mxu0
    %v461 = vadd.f32 %v342, %v460
    %v462 = vpop.f32.mrf.mxu0
    %v463 = vpop.f32.mrf.mxu0
    %v464 = vadd.f32 %v347, %v463
    %v465 = vpop.f32.mrf.mxu0
    %466 = vmatprep.mubr.bf16.mxu0 0
    %467 = vmatmul.mubr.bf16.gmra.mxu0 %v405
    %v468 = vpop.f32.mrf.mxu0
    %v469 = vadd.f32 %v352, %v468
    %v470 = vpop.f32.mrf.mxu0
    %v471 = vpop.f32.mrf.mxu0
    %v472 = vadd.f32 %v357, %v471
    %v473 = vpop.f32.mrf.mxu0
    %474 = vmatprep.mubr.bf16.mxu0 0
    %475 = vmatmul.mubr.bf16.gmra.mxu0 %v408
    %v476 = vpop.f32.mrf.mxu0
    %v477 = vadd.f32 %v362, %v476
    %v478 = vpop.f32.mrf.mxu0
    %v479 = vpop.f32.mrf.mxu0
    %v480 = vadd.f32 %v367, %v479
    %v481 = vpop.f32.mrf.mxu0
    %482 = vdwg.mxu0
    %v483 = vmax.f32 %v445, 0.0
    %v484 = vmax.f32 %v448, 0.0
    %v485 = vmax.f32 %v453, 0.0
    %v486 = vmax.f32 %v456, 0.0
    %v487 = vmax.f32 %v461, 0.0
    %v488 = vmax.f32 %v464, 0.0
    %v489 = vmax.f32 %v469, 0.0
    %v490 = vmax.f32 %v472, 0.0
    %v491 = vmax.f32 %v477, 0.0
    %v492 = vmax.f32 %v480, 0.0
    %v493 = vpack.c.bf16 %v484, %v483
    %v494 = vpack.c.bf16 %v486, %v485
    %v495 = vpack.c.bf16 %v488, %v487
    %v496 = vpack.c.bf16 %v490, %v489
    %v497 = vpack.c.bf16 %v492, %v491
    %v498 = vld [vmem:[%s5] sm:$0xf]
    %v499 = vld [vmem:[%s5 + $0x4] sm:$0xf]
    %v500 = vld [vmem:[%s5 + $0x8] sm:$0xf]
    %v501 = vld [vmem:[%s5 + $0xc] sm:$0xf]
    %v502 = vld [vmem:[%s5 + $0x10] sm:$0xf]
    %v503 = vld [vmem:[%s6] sm:$0xff]
    %v504 = vld [vmem:[%s6 + $0x8] sm:$0xff]
    %v505 = vld [vmem:[%s6 + $0x10] sm:$0xff]
    %v506 = vld [vmem:[%s6 + $0x18] sm:$0xff]
    %v507 = vld [vmem:[%s6 + $0x20] sm:$0xff]
    %509 = vset.pattern.permute.xlu0 0
    %510 = vperm.xlu0 %509, %v503
    %v511 = vpop.permute.xlu0 %510
    %514 = vset.pattern.permute.xlu0 0
    %515 = vperm.xlu0 %514, %v504
    %v516 = vpop.permute.xlu0 %515
    %519 = vset.pattern.permute.xlu0 0
    %520 = vperm.xlu0 %519, %v505
    %v521 = vpop.permute.xlu0 %520
    %524 = vset.pattern.permute.xlu0 0
    %525 = vperm.xlu0 %524, %v506
    %v526 = vpop.permute.xlu0 %525
    %529 = vset.pattern.permute.xlu0 0
    %530 = vperm.xlu0 %529, %v507
    %v531 = vpop.permute.xlu0 %530
    %v538 = vunpack.c.l.b16 %v498
    %v539 = vunpack.c.l.b16 %v499
    %v540 = vunpack.c.l.b16 %v500
    %v541 = vunpack.c.l.b16 %v501
    %v542 = vunpack.c.l.b16 %v502
    %v543 = vpack.c.b16 %v539, %v538
    %v544 = vpack.c.b16 %v541, %v540
    %v545 = vpack.c.b16 %v542, %v542
    %vm546 = vcmask 654336
    %v548 = vsel %vm546, %v543, 0
    %v551 = vsel %vm546, %v544, 0
    %v554 = vsel %vm546, %v545, 0
    %556 = vmatprep.subr.bf16.mxu0 0
    %557 = vmatpush1.bf16.msra.mxu0 0
    %558 = vmatprep.subr.bf16.mxu0 0
    %559 = vmatpush1.bf16.msra.mxu0 0
    %560 = vmatprep.subr.bf16.mxu0 0
    %561 = vmatpush1.bf16.msra.mxu0 0
    %562 = vmatprep.subr.bf16.mxu0 0
    %563 = vmatpush1.bf16.msra.mxu0 %v497
    %564 = vmatprep.subr.bf16.mxu0 0
    %565 = vmatpush1.bf16.msra.mxu0 %v496
    %566 = vmatprep.subr.bf16.mxu0 0
    %567 = vmatpush1.bf16.msra.mxu0 %v495
    %568 = vmatprep.subr.bf16.mxu0 0
    %569 = vmatpush1.bf16.msra.mxu0 %v494
    %570 = vmatprep.subr.bf16.mxu0 0
    %571 = vmatpush1.bf16.msra.mxu0 %v493
    %572 = vmatprep.subr.bf16.mxu0 0
    %573 = vmatpush2.bf16.msra.mxu0 0
    %574 = vmatprep.subr.bf16.mxu0 0
    %575 = vmatpush2.bf16.msra.mxu0 0
    %576 = vmatprep.subr.bf16.mxu0 0
    %577 = vmatpush2.bf16.msra.mxu0 0
    %578 = vmatprep.subr.bf16.mxu0 0
    %579 = vmatpush2.bf16.msra.mxu0 0
    %580 = vmatprep.subr.bf16.mxu0 0
    %581 = vmatpush2.bf16.msra.mxu0 0
    %582 = vmatprep.subr.bf16.mxu0 0
    %583 = vmatpush2.bf16.msra.mxu0 0
    %584 = vmatprep.subr.bf16.mxu0 0
    %585 = vmatpush2.bf16.msra.mxu0 0
    %586 = vmatprep.subr.bf16.mxu0 0
    %587 = vmatpush2.bf16.msra.mxu0 0
    %588 = vmatprep.mubr.bf16.mxu0 0
    %589 = vmatmul.mubr.bf16.gmra.mxu0 %v548
    %v590 = vpop.f32.mrf.mxu0
    %v591 = vadd.f32 %v511, %v590
    %v592 = vpop.f32.mrf.mxu0
    %v593 = vpop.f32.mrf.mxu0
    %v594 = vadd.f32 %v516, %v593
    %v595 = vpop.f32.mrf.mxu0
    %596 = vmatprep.mubr.bf16.mxu0 0
    %597 = vmatmul.mubr.bf16.gmra.mxu0 %v551
    %v598 = vpop.f32.mrf.mxu0
    %v599 = vadd.f32 %v521, %v598
    %v600 = vpop.f32.mrf.mxu0
    %v601 = vpop.f32.mrf.mxu0
    %v602 = vadd.f32 %v526, %v601
    %v603 = vpop.f32.mrf.mxu0
    %604 = vmatprep.mubr.bf16.mxu0 0
    %605 = vmatmul.mubr.bf16.gmra.mxu0 %v554
    %v606 = vpop.f32.mrf.mxu0
    %v607 = vadd.f32 %v531, %v606
    %v608 = vpop.f32.mrf.mxu0
    %v609 = vpop.f32.mrf.mxu0
    %v610 = vpop.f32.mrf.mxu0
    %611 = vdwg.mxu0
    %v612 = vpack.c.bf16 %v594, %v591
    %v613 = vpack.c.bf16 %v602, %v599
    %v614 = vpack.c.bf16 %v607, %v607
    %v615 = vld [vmem:[%s7] sm:$0xf]
    %v616 = vld [vmem:[%s7 + $0x4] sm:$0xf]
    %v617 = vld [vmem:[%s7 + $0x8] sm:$0xf]
    %v618 = vld [vmem:[%s7 + $0xc] sm:$0xf]
    %v619 = vld [vmem:[%s7 + $0x10] sm:$0xf]
    %v620 = vld [vmem:[%s7 + $0x14] sm:$0xf]
    %v621 = vld [vmem:[%s7 + $0x18] sm:$0xf]
    %v622 = vld [vmem:[%s7 + $0x1c] sm:$0xf]
    %v623 = vld [vmem:[%s7 + $0x20] sm:$0xf]
    %v624 = vld [vmem:[%s7 + $0x24] sm:$0xf]
    %v625 = vld [vmem:[%s8] sm:$0xff]
    %v626 = vld [vmem:[%s8 + $0x8] sm:$0xff]
    %v627 = vld [vmem:[%s8 + $0x10] sm:$0xff]
    %v628 = vld [vmem:[%s8 + $0x18] sm:$0xff]
    %v629 = vld [vmem:[%s8 + $0x20] sm:$0xff]
    %v630 = vld [vmem:[%s8 + $0x28] sm:$0xff]
    %v631 = vld [vmem:[%s8 + $0x30] sm:$0xff]
    %v632 = vld [vmem:[%s8 + $0x38] sm:$0xff]
    %v633 = vld [vmem:[%s8 + $0x40] sm:$0xff]
    %v634 = vld [vmem:[%s8 + $0x48] sm:$0xff]
    %636 = vset.pattern.permute.xlu0 0
    %637 = vperm.xlu0 %636, %v625
    %v638 = vpop.permute.xlu0 %637
    %641 = vset.pattern.permute.xlu0 0
    %642 = vperm.xlu0 %641, %v626
    %v643 = vpop.permute.xlu0 %642
    %646 = vset.pattern.permute.xlu0 0
    %647 = vperm.xlu0 %646, %v627
    %v648 = vpop.permute.xlu0 %647
    %651 = vset.pattern.permute.xlu0 0
    %652 = vperm.xlu0 %651, %v628
    %v653 = vpop.permute.xlu0 %652
    %656 = vset.pattern.permute.xlu0 0
    %657 = vperm.xlu0 %656, %v629
    %v658 = vpop.permute.xlu0 %657
    %661 = vset.pattern.permute.xlu0 0
    %662 = vperm.xlu0 %661, %v630
    %v663 = vpop.permute.xlu0 %662
    %666 = vset.pattern.permute.xlu0 0
    %667 = vperm.xlu0 %666, %v631
    %v668 = vpop.permute.xlu0 %667
    %671 = vset.pattern.permute.xlu0 0
    %672 = vperm.xlu0 %671, %v632
    %v673 = vpop.permute.xlu0 %672
    %676 = vset.pattern.permute.xlu0 0
    %677 = vperm.xlu0 %676, %v633
    %v678 = vpop.permute.xlu0 %677
    %681 = vset.pattern.permute.xlu0 0
    %682 = vperm.xlu0 %681, %v634
    %v683 = vpop.permute.xlu0 %682
    %v695 = vunpack.c.l.b16 %v615
    %v696 = vunpack.c.l.b16 %v616
    %v697 = vunpack.c.l.b16 %v617
    %v698 = vunpack.c.l.b16 %v618
    %v699 = vunpack.c.l.b16 %v619
    %v700 = vunpack.c.l.b16 %v620
    %v701 = vunpack.c.l.b16 %v621
    %v702 = vunpack.c.l.b16 %v622
    %v703 = vunpack.c.l.b16 %v623
    %v704 = vunpack.c.l.b16 %v624
    %v705 = vpack.c.b16 %v696, %v695
    %v706 = vpack.c.b16 %v698, %v697
    %v707 = vpack.c.b16 %v700, %v699
    %v708 = vpack.c.b16 %v702, %v701
    %v709 = vpack.c.b16 %v704, %v703
    %vm710 = vcmask 326656
    %v712 = vsel %vm710, %v705, 0
    %v715 = vsel %vm710, %v706, 0
    %v718 = vsel %vm710, %v707, 0
    %v721 = vsel %vm710, %v708, 0
    %v724 = vsel %vm710, %v709, 0
    %vm726 = vcmask 1043456
    %v728 = vsel %vm726, %v614, 0
    %730 = vmatprep.subr.bf16.mxu0 0
    %731 = vmatpush1.bf16.msra.mxu0 0
    %732 = vmatprep.subr.bf16.mxu0 0
    %733 = vmatpush1.bf16.msra.mxu0 0
    %734 = vmatprep.subr.bf16.mxu0 0
    %735 = vmatpush1.bf16.msra.mxu0 0
    %736 = vmatprep.subr.bf16.mxu0 0
    %737 = vmatpush1.bf16.msra.mxu0 0
    %738 = vmatprep.subr.bf16.mxu0 0
    %739 = vmatpush1.bf16.msra.mxu0 0
    %740 = vmatprep.subr.bf16.mxu0 0
    %741 = vmatpush1.bf16.msra.mxu0 %v728
    %742 = vmatprep.subr.bf16.mxu0 0
    %743 = vmatpush1.bf16.msra.mxu0 %v613
    %744 = vmatprep.subr.bf16.mxu0 0
    %745 = vmatpush1.bf16.msra.mxu0 %v612
    %746 = vmatprep.subr.bf16.mxu0 0
    %747 = vmatpush2.bf16.msra.mxu0 0
    %748 = vmatprep.subr.bf16.mxu0 0
    %749 = vmatpush2.bf16.msra.mxu0 0
    %750 = vmatprep.subr.bf16.mxu0 0
    %751 = vmatpush2.bf16.msra.mxu0 0
    %752 = vmatprep.subr.bf16.mxu0 0
    %753 = vmatpush2.bf16.msra.mxu0 0
    %754 = vmatprep.subr.bf16.mxu0 0
    %755 = vmatpush2.bf16.msra.mxu0 0
    %756 = vmatprep.subr.bf16.mxu0 0
    %757 = vmatpush2.bf16.msra.mxu0 0
    %758 = vmatprep.subr.bf16.mxu0 0
    %759 = vmatpush2.bf16.msra.mxu0 0
    %760 = vmatprep.subr.bf16.mxu0 0
    %761 = vmatpush2.bf16.msra.mxu0 0
    %762 = vmatprep.mubr.bf16.mxu0 0
    %763 = vmatmul.mubr.bf16.gmra.mxu0 %v712
    %v764 = vpop.f32.mrf.mxu0
    %v765 = vadd.f32 %v638, %v764
    %v766 = vpop.f32.mrf.mxu0
    %v767 = vpop.f32.mrf.mxu0
    %v768 = vadd.f32 %v643, %v767
    %v769 = vpop.f32.mrf.mxu0
    %770 = vmatprep.mubr.bf16.mxu0 0
    %771 = vmatmul.mubr.bf16.gmra.mxu0 %v715
    %v772 = vpop.f32.mrf.mxu0
    %v773 = vadd.f32 %v648, %v772
    %v774 = vpop.f32.mrf.mxu0
    %v775 = vpop.f32.mrf.mxu0
    %v776 = vadd.f32 %v653, %v775
    %v777 = vpop.f32.mrf.mxu0
    %778 = vmatprep.mubr.bf16.mxu0 0
    %779 = vmatmul.mubr.bf16.gmra.mxu0 %v718
    %v780 = vpop.f32.mrf.mxu0
    %v781 = vadd.f32 %v658, %v780
    %v782 = vpop.f32.mrf.mxu0
    %v783 = vpop.f32.mrf.mxu0
    %v784 = vadd.f32 %v663, %v783
    %v785 = vpop.f32.mrf.mxu0
    %786 = vmatprep.mubr.bf16.mxu0 0
    %787 = vmatmul.mubr.bf16.gmra.mxu0 %v721
    %v788 = vpop.f32.mrf.mxu0
    %v789 = vadd.f32 %v668, %v788
    %v790 = vpop.f32.mrf.mxu0
    %v791 = vpop.f32.mrf.mxu0
    %v792 = vadd.f32 %v673, %v791
    %v793 = vpop.f32.mrf.mxu0
    %794 = vmatprep.mubr.bf16.mxu0 0
    %795 = vmatmul.mubr.bf16.gmra.mxu0 %v724
    %v796 = vpop.f32.mrf.mxu0
    %v797 = vadd.f32 %v678, %v796
    %v798 = vpop.f32.mrf.mxu0
    %v799 = vpop.f32.mrf.mxu0
    %v800 = vadd.f32 %v683, %v799
    %v801 = vpop.f32.mrf.mxu0
    %802 = vdwg.mxu0
    %v803 = vmax.f32 %v765, 0.0
    %v804 = vmax.f32 %v768, 0.0
    %v805 = vmax.f32 %v773, 0.0
    %v806 = vmax.f32 %v776, 0.0
    %v807 = vmax.f32 %v781, 0.0
    %v808 = vmax.f32 %v784, 0.0
    %v809 = vmax.f32 %v789, 0.0
    %v810 = vmax.f32 %v792, 0.0
    %v811 = vmax.f32 %v797, 0.0
    %v812 = vmax.f32 %v800, 0.0
    %v813 = vpack.c.bf16 %v804, %v803
    %v814 = vpack.c.bf16 %v806, %v805
    %v815 = vpack.c.bf16 %v808, %v807
    %v816 = vpack.c.bf16 %v810, %v809
    %v817 = vpack.c.bf16 %v812, %v811
    %v818 = vld [vmem:[%s9] sm:$0xf]
    %v819 = vld [vmem:[%s9 + $0x4] sm:$0xf]
    %v820 = vld [vmem:[%s9 + $0x8] sm:$0xf]
    %v821 = vld [vmem:[%s9 + $0xc] sm:$0xf]
    %v822 = vld [vmem:[%s9 + $0x10] sm:$0xf]
    %v823 = vld [vmem:[%s9 + $0x14] sm:$0xf]
    %v824 = vld [vmem:[%s9 + $0x18] sm:$0xf]
    %v825 = vld [vmem:[%s9 + $0x1c] sm:$0xf]
    %v826 = vld [vmem:[%s9 + $0x20] sm:$0xf]
    %v827 = vld [vmem:[%s9 + $0x24] sm:$0xf]
    %v828 = vld [vmem:[%s9 + $0x28] sm:$0xf]
    %v829 = vld [vmem:[%s9 + $0x2c] sm:$0xf]
    %v830 = vld [vmem:[%s10] sm:$0xff]
    %v831 = vld [vmem:[%s10 + $0x8] sm:$0xff]
    %v832 = vld [vmem:[%s10 + $0x10] sm:$0xff]
    %v833 = vld [vmem:[%s10 + $0x18] sm:$0xff]
    %v834 = vld [vmem:[%s10 + $0x20] sm:$0xff]
    %v835 = vld [vmem:[%s10 + $0x28] sm:$0xff]
    %v836 = vld [vmem:[%s10 + $0x30] sm:$0xff]
    %v837 = vld [vmem:[%s10 + $0x38] sm:$0xff]
    %v838 = vld [vmem:[%s10 + $0x40] sm:$0xff]
    %v839 = vld [vmem:[%s10 + $0x48] sm:$0xff]
    %v840 = vld [vmem:[%s10 + $0x50] sm:$0xff]
    %v841 = vld [vmem:[%s10 + $0x58] sm:$0xff]
    %843 = vset.pattern.permute.xlu0 0
    %844 = vperm.xlu0 %843, %v830
    %v845 = vpop.permute.xlu0 %844
    %848 = vset.pattern.permute.xlu0 0
    %849 = vperm.xlu0 %848, %v831
    %v850 = vpop.permute.xlu0 %849
    %853 = vset.pattern.permute.xlu0 0
    %854 = vperm.xlu0 %853, %v832
    %v855 = vpop.permute.xlu0 %854
    %858 = vset.pattern.permute.xlu0 0
    %859 = vperm.xlu0 %858, %v833
    %v860 = vpop.permute.xlu0 %859
    %863 = vset.pattern.permute.xlu0 0
    %864 = vperm.xlu0 %863, %v834
    %v865 = vpop.permute.xlu0 %864
    %868 = vset.pattern.permute.xlu0 0
    %869 = vperm.xlu0 %868, %v835
    %v870 = vpop.permute.xlu0 %869
    %873 = vset.pattern.permute.xlu0 0
    %874 = vperm.xlu0 %873, %v836
    %v875 = vpop.permute.xlu0 %874
    %878 = vset.pattern.permute.xlu0 0
    %879 = vperm.xlu0 %878, %v837
    %v880 = vpop.permute.xlu0 %879
    %883 = vset.pattern.permute.xlu0 0
    %884 = vperm.xlu0 %883, %v838
    %v885 = vpop.permute.xlu0 %884
    %888 = vset.pattern.permute.xlu0 0
    %889 = vperm.xlu0 %888, %v839
    %v890 = vpop.permute.xlu0 %889
    %893 = vset.pattern.permute.xlu0 0
    %894 = vperm.xlu0 %893, %v840
    %v895 = vpop.permute.xlu0 %894
    %898 = vset.pattern.permute.xlu0 0
    %899 = vperm.xlu0 %898, %v841
    %v900 = vpop.permute.xlu0 %899
    %v914 = vunpack.c.l.b16 %v818
    %v915 = vunpack.c.l.b16 %v819
    %v916 = vunpack.c.l.b16 %v820
    %v917 = vunpack.c.l.b16 %v821
    %v918 = vunpack.c.l.b16 %v822
    %v919 = vunpack.c.l.b16 %v823
    %v920 = vunpack.c.l.b16 %v824
    %v921 = vunpack.c.l.b16 %v825
    %v922 = vunpack.c.l.b16 %v826
    %v923 = vunpack.c.l.b16 %v827
    %v924 = vunpack.c.l.b16 %v828
    %v925 = vunpack.c.l.b16 %v829
    %v926 = vpack.c.b16 %v915, %v914
    %v927 = vpack.c.b16 %v917, %v916
    %v928 = vpack.c.b16 %v919, %v918
    %v929 = vpack.c.b16 %v921, %v920
    %v930 = vpack.c.b16 %v923, %v922
    %v931 = vpack.c.b16 %v925, %v924
    %v933 = vsel %vm546, %v926, 0
    %v936 = vsel %vm546, %v927, 0
    %v939 = vsel %vm546, %v928, 0
    %v942 = vsel %vm546, %v929, 0
    %v945 = vsel %vm546, %v930, 0
    %v948 = vsel %vm546, %v931, 0
    %950 = vmatprep.subr.bf16.mxu0 0
    %951 = vmatpush1.bf16.msra.mxu0 0
    %952 = vmatprep.subr.bf16.mxu0 0
    %953 = vmatpush1.bf16.msra.mxu0 0
    %954 = vmatprep.subr.bf16.mxu0 0
    %955 = vmatpush1.bf16.msra.mxu0 0
    %956 = vmatprep.subr.bf16.mxu0 0
    %957 = vmatpush1.bf16.msra.mxu0 %v817
    %958 = vmatprep.subr.bf16.mxu0 0
    %959 = vmatpush1.bf16.msra.mxu0 %v816
    %960 = vmatprep.subr.bf16.mxu0 0
    %961 = vmatpush1.bf16.msra.mxu0 %v815
    %962 = vmatprep.subr.bf16.mxu0 0
    %963 = vmatpush1.bf16.msra.mxu0 %v814
    %964 = vmatprep.subr.bf16.mxu0 0
    %965 = vmatpush1.bf16.msra.mxu0 %v813
    %966 = vmatprep.subr.bf16.mxu0 0
    %967 = vmatpush2.bf16.msra.mxu0 0
    %968 = vmatprep.subr.bf16.mxu0 0
    %969 = vmatpush2.bf16.msra.mxu0 0
    %970 = vmatprep.subr.bf16.mxu0 0
    %971 = vmatpush2.bf16.msra.mxu0 0
    %972 = vmatprep.subr.bf16.mxu0 0
    %973 = vmatpush2.bf16.msra.mxu0 0
    %974 = vmatprep.subr.bf16.mxu0 0
    %975 = vmatpush2.bf16.msra.mxu0 0
    %976 = vmatprep.subr.bf16.mxu0 0
    %977 = vmatpush2.bf16.msra.mxu0 0
    %978 = vmatprep.subr.bf16.mxu0 0
    %979 = vmatpush2.bf16.msra.mxu0 0
    %980 = vmatprep.subr.bf16.mxu0 0
    %981 = vmatpush2.bf16.msra.mxu0 0
    %982 = vmatprep.mubr.bf16.mxu0 0
    %983 = vmatmul.mubr.bf16.gmra.mxu0 %v933
    %v984 = vpop.f32.mrf.mxu0
    %v985 = vadd.f32 %v845, %v984
    %v986 = vpop.f32.mrf.mxu0
    %v987 = vpop.f32.mrf.mxu0
    %v988 = vadd.f32 %v850, %v987
    %v989 = vpop.f32.mrf.mxu0
    %990 = vmatprep.mubr.bf16.mxu0 0
    %991 = vmatmul.mubr.bf16.gmra.mxu0 %v936
    %v992 = vpop.f32.mrf.mxu0
    %v993 = vadd.f32 %v855, %v992
    %v994 = vpop.f32.mrf.mxu0
    %v995 = vpop.f32.mrf.mxu0
    %v996 = vadd.f32 %v860, %v995
    %v997 = vpop.f32.mrf.mxu0
    %998 = vmatprep.mubr.bf16.mxu0 0
    %999 = vmatmul.mubr.bf16.gmra.mxu0 %v939
    %v1000 = vpop.f32.mrf.mxu0
    %v1001 = vadd.f32 %v865, %v1000
    %v1002 = vpop.f32.mrf.mxu0
    %v1003 = vpop.f32.mrf.mxu0
    %v1004 = vadd.f32 %v870, %v1003
    %v1005 = vpop.f32.mrf.mxu0
    %1006 = vmatprep.mubr.bf16.mxu0 0
    %1007 = vmatmul.mubr.bf16.gmra.mxu0 %v942
    %v1008 = vpop.f32.mrf.mxu0
    %v1009 = vadd.f32 %v875, %v1008
    %v1010 = vpop.f32.mrf.mxu0
    %v1011 = vpop.f32.mrf.mxu0
    %v1012 = vadd.f32 %v880, %v1011
    %v1013 = vpop.f32.mrf.mxu0
    %1014 = vmatprep.mubr.bf16.mxu0 0
    %1015 = vmatmul.mubr.bf16.gmra.mxu0 %v945
    %v1016 = vpop.f32.mrf.mxu0
    %v1017 = vadd.f32 %v885, %v1016
    %v1018 = vpop.f32.mrf.mxu0
    %v1019 = vpop.f32.mrf.mxu0
    %v1020 = vadd.f32 %v890, %v1019
    %v1021 = vpop.f32.mrf.mxu0
    %1022 = vmatprep.mubr.bf16.mxu0 0
    %1023 = vmatmul.mubr.bf16.gmra.mxu0 %v948
    %v1024 = vpop.f32.mrf.mxu0
    %v1025 = vadd.f32 %v895, %v1024
    %v1026 = vpop.f32.mrf.mxu0
    %v1027 = vpop.f32.mrf.mxu0
    %v1028 = vadd.f32 %v900, %v1027
    %v1029 = vpop.f32.mrf.mxu0
    %1030 = vdwg.mxu0
    %v1031 = vmax.f32 %v985, 0.0
    %v1032 = vmax.f32 %v988, 0.0
    %v1033 = vmax.f32 %v993, 0.0
    %v1034 = vmax.f32 %v996, 0.0
    %v1035 = vmax.f32 %v1001, 0.0
    %v1036 = vmax.f32 %v1004, 0.0
    %v1037 = vmax.f32 %v1009, 0.0
    %v1038 = vmax.f32 %v1012, 0.0
    %v1039 = vmax.f32 %v1017, 0.0
    %v1040 = vmax.f32 %v1020, 0.0
    %v1041 = vmax.f32 %v1025, 0.0
    %v1042 = vmax.f32 %v1028, 0.0
    %v1043 = vpack.c.bf16 %v1032, %v1031
    %v1044 = vpack.c.bf16 %v1034, %v1033
    %v1045 = vpack.c.bf16 %v1036, %v1035
    %v1046 = vpack.c.bf16 %v1038, %v1037
    %v1047 = vpack.c.bf16 %v1040, %v1039
    %v1048 = vpack.c.bf16 %v1042, %v1041
    %v1049 = vld [vmem:[%s11] sm:$0xf]
    %v1050 = vld [vmem:[%s11 + $0x4] sm:$0xf]
    %v1051 = vld [vmem:[%s11 + $0x8] sm:$0xf]
    %v1052 = vld [vmem:[%s11 + $0xc] sm:$0xf]
    %v1053 = vld [vmem:[%s11 + $0x10] sm:$0xf]
    %v1054 = vld [vmem:[%s11 + $0x14] sm:$0xf]
    %v1055 = vld [vmem:[%s11 + $0x18] sm:$0xf]
    %v1056 = vld [vmem:[%s11 + $0x1c] sm:$0xf]
    %v1057 = vld [vmem:[%s11 + $0x20] sm:$0xf]
    %v1058 = vld [vmem:[%s11 + $0x24] sm:$0xf]
    %v1059 = vld [vmem:[%s11 + $0x28] sm:$0xf]
    %v1060 = vld [vmem:[%s11 + $0x2c] sm:$0xf]
    %v1061 = vld [vmem:[%s11 + $0x30] sm:$0xf]
    %v1062 = vld [vmem:[%s11 + $0x34] sm:$0xf]
    %v1063 = vld [vmem:[%s12] sm:$0xff]
    %v1064 = vld [vmem:[%s12 + $0x8] sm:$0xff]
    %v1065 = vld [vmem:[%s12 + $0x10] sm:$0xff]
    %v1066 = vld [vmem:[%s12 + $0x18] sm:$0xff]
    %v1067 = vld [vmem:[%s12 + $0x20] sm:$0xff]
    %v1068 = vld [vmem:[%s12 + $0x28] sm:$0xff]
    %v1069 = vld [vmem:[%s12 + $0x30] sm:$0xff]
    %v1070 = vld [vmem:[%s12 + $0x38] sm:$0xff]
    %v1071 = vld [vmem:[%s12 + $0x40] sm:$0xff]
    %v1072 = vld [vmem:[%s12 + $0x48] sm:$0xff]
    %v1073 = vld [vmem:[%s12 + $0x50] sm:$0xff]
    %v1074 = vld [vmem:[%s12 + $0x58] sm:$0xff]
    %v1075 = vld [vmem:[%s12 + $0x60] sm:$0xff]
    %v1076 = vld [vmem:[%s12 + $0x68] sm:$0xff]
    %1078 = vset.pattern.permute.xlu0 0
    %1079 = vperm.xlu0 %1078, %v1063
    %v1080 = vpop.permute.xlu0 %1079
    %1083 = vset.pattern.permute.xlu0 0
    %1084 = vperm.xlu0 %1083, %v1064
    %v1085 = vpop.permute.xlu0 %1084
    %1088 = vset.pattern.permute.xlu0 0
    %1089 = vperm.xlu0 %1088, %v1065
    %v1090 = vpop.permute.xlu0 %1089
    %1093 = vset.pattern.permute.xlu0 0
    %1094 = vperm.xlu0 %1093, %v1066
    %v1095 = vpop.permute.xlu0 %1094
    %1098 = vset.pattern.permute.xlu0 0
    %1099 = vperm.xlu0 %1098, %v1067
    %v1100 = vpop.permute.xlu0 %1099
    %1103 = vset.pattern.permute.xlu0 0
    %1104 = vperm.xlu0 %1103, %v1068
    %v1105 = vpop.permute.xlu0 %1104
    %1108 = vset.pattern.permute.xlu0 0
    %1109 = vperm.xlu0 %1108, %v1069
    %v1110 = vpop.permute.xlu0 %1109
    %1113 = vset.pattern.permute.xlu0 0
    %1114 = vperm.xlu0 %1113, %v1070
    %v1115 = vpop.permute.xlu0 %1114
    %1118 = vset.pattern.permute.xlu0 0
    %1119 = vperm.xlu0 %1118, %v1071
    %v1120 = vpop.permute.xlu0 %1119
    %1123 = vset.pattern.permute.xlu0 0
    %1124 = vperm.xlu0 %1123, %v1072
    %v1125 = vpop.permute.xlu0 %1124
    %1128 = vset.pattern.permute.xlu0 0
    %1129 = vperm.xlu0 %1128, %v1073
    %v1130 = vpop.permute.xlu0 %1129
    %1133 = vset.pattern.permute.xlu0 0
    %1134 = vperm.xlu0 %1133, %v1074
    %v1135 = vpop.permute.xlu0 %1134
    %1138 = vset.pattern.permute.xlu0 0
    %1139 = vperm.xlu0 %1138, %v1075
    %v1140 = vpop.permute.xlu0 %1139
    %1143 = vset.pattern.permute.xlu0 0
    %1144 = vperm.xlu0 %1143, %v1076
    %v1145 = vpop.permute.xlu0 %1144
    %v1161 = vunpack.c.l.b16 %v1049
    %v1162 = vunpack.c.l.b16 %v1050
    %v1163 = vunpack.c.l.b16 %v1051
    %v1164 = vunpack.c.l.b16 %v1052
    %v1165 = vunpack.c.l.b16 %v1053
    %v1166 = vunpack.c.l.b16 %v1054
    %v1167 = vunpack.c.l.b16 %v1055
    %v1168 = vunpack.c.l.b16 %v1056
    %v1169 = vunpack.c.l.b16 %v1057
    %v1170 = vunpack.c.l.b16 %v1058
    %v1171 = vunpack.c.l.b16 %v1059
    %v1172 = vunpack.c.l.b16 %v1060
    %v1173 = vunpack.c.l.b16 %v1061
    %v1174 = vunpack.c.l.b16 %v1062
    %v1175 = vpack.c.b16 %v1162, %v1161
    %v1176 = vpack.c.b16 %v1164, %v1163
    %v1177 = vpack.c.b16 %v1166, %v1165
    %v1178 = vpack.c.b16 %v1168, %v1167
    %v1179 = vpack.c.b16 %v1170, %v1169
    %v1180 = vpack.c.b16 %v1172, %v1171
    %v1181 = vpack.c.b16 %v1174, %v1173
    %v1183 = vsel %vm394, %v1175, 0
    %v1186 = vsel %vm394, %v1176, 0
    %v1189 = vsel %vm394, %v1177, 0
    %v1192 = vsel %vm394, %v1178, 0
    %v1195 = vsel %vm394, %v1179, 0
    %v1198 = vsel %vm394, %v1180, 0
    %v1201 = vsel %vm394, %v1181, 0
    %1203 = vmatprep.subr.bf16.mxu0 0
    %1204 = vmatpush1.bf16.msra.mxu0 0
    %1205 = vmatprep.subr.bf16.mxu0 0
    %1206 = vmatpush1.bf16.msra.mxu0 0
    %1207 = vmatprep.subr.bf16.mxu0 0
    %1208 = vmatpush1.bf16.msra.mxu0 %v1048
    %1209 = vmatprep.subr.bf16.mxu0 0
    %1210 = vmatpush1.bf16.msra.mxu0 %v1047
    %1211 = vmatprep.subr.bf16.mxu0 0
    %1212 = vmatpush1.bf16.msra.mxu0 %v1046
    %1213 = vmatprep.subr.bf16.mxu0 0
    %1214 = vmatpush1.bf16.msra.mxu0 %v1045
    %1215 = vmatprep.subr.bf16.mxu0 0
    %1216 = vmatpush1.bf16.msra.mxu0 %v1044
    %1217 = vmatprep.subr.bf16.mxu0 0
    %1218 = vmatpush1.bf16.msra.mxu0 %v1043
    %1219 = vmatprep.subr.bf16.mxu0 0
    %1220 = vmatpush2.bf16.msra.mxu0 0
    %1221 = vmatprep.subr.bf16.mxu0 0
    %1222 = vmatpush2.bf16.msra.mxu0 0
    %1223 = vmatprep.subr.bf16.mxu0 0
    %1224 = vmatpush2.bf16.msra.mxu0 0
    %1225 = vmatprep.subr.bf16.mxu0 0
    %1226 = vmatpush2.bf16.msra.mxu0 0
    %1227 = vmatprep.subr.bf16.mxu0 0
    %1228 = vmatpush2.bf16.msra.mxu0 0
    %1229 = vmatprep.subr.bf16.mxu0 0
    %1230 = vmatpush2.bf16.msra.mxu0 0
    %1231 = vmatprep.subr.bf16.mxu0 0
    %1232 = vmatpush2.bf16.msra.mxu0 0
    %1233 = vmatprep.subr.bf16.mxu0 0
    %1234 = vmatpush2.bf16.msra.mxu0 0
    %1235 = vmatprep.mubr.bf16.mxu0 0
    %1236 = vmatmul.mubr.bf16.gmra.mxu0 %v1183
    %v1237 = vpop.f32.mrf.mxu0
    %v1238 = vadd.f32 %v1080, %v1237
    %v1239 = vpop.f32.mrf.mxu0
    %v1240 = vpop.f32.mrf.mxu0
    %v1241 = vadd.f32 %v1085, %v1240
    %v1242 = vpop.f32.mrf.mxu0
    %1243 = vmatprep.mubr.bf16.mxu0 0
    %1244 = vmatmul.mubr.bf16.gmra.mxu0 %v1186
    %v1245 = vpop.f32.mrf.mxu0
    %v1246 = vadd.f32 %v1090, %v1245
    %v1247 = vpop.f32.mrf.mxu0
    %v1248 = vpop.f32.mrf.mxu0
    %v1249 = vadd.f32 %v1095, %v1248
    %v1250 = vpop.f32.mrf.mxu0
    %1251 = vmatprep.mubr.bf16.mxu0 0
    %1252 = vmatmul.mubr.bf16.gmra.mxu0 %v1189
    %v1253 = vpop.f32.mrf.mxu0
    %v1254 = vadd.f32 %v1100, %v1253
    %v1255 = vpop.f32.mrf.mxu0
    %v1256 = vpop.f32.mrf.mxu0
    %v1257 = vadd.f32 %v1105, %v1256
    %v1258 = vpop.f32.mrf.mxu0
    %1259 = vmatprep.mubr.bf16.mxu0 0
    %1260 = vmatmul.mubr.bf16.gmra.mxu0 %v1192
    %v1261 = vpop.f32.mrf.mxu0
    %v1262 = vadd.f32 %v1110, %v1261
    %v1263 = vpop.f32.mrf.mxu0
    %v1264 = vpop.f32.mrf.mxu0
    %v1265 = vadd.f32 %v1115, %v1264
    %v1266 = vpop.f32.mrf.mxu0
    %1267 = vmatprep.mubr.bf16.mxu0 0
    %1268 = vmatmul.mubr.bf16.gmra.mxu0 %v1195
    %v1269 = vpop.f32.mrf.mxu0
    %v1270 = vadd.f32 %v1120, %v1269
    %v1271 = vpop.f32.mrf.mxu0
    %v1272 = vpop.f32.mrf.mxu0
    %v1273 = vadd.f32 %v1125, %v1272
    %v1274 = vpop.f32.mrf.mxu0
    %1275 = vmatprep.mubr.bf16.mxu0 0
    %1276 = vmatmul.mubr.bf16.gmra.mxu0 %v1198
    %v1277 = vpop.f32.mrf.mxu0
    %v1278 = vadd.f32 %v1130, %v1277
    %v1279 = vpop.f32.mrf.mxu0
    %v1280 = vpop.f32.mrf.mxu0
    %v1281 = vadd.f32 %v1135, %v1280
    %v1282 = vpop.f32.mrf.mxu0
    %1283 = vmatprep.mubr.bf16.mxu0 0
    %1284 = vmatmul.mubr.bf16.gmra.mxu0 %v1201
    %v1285 = vpop.f32.mrf.mxu0
    %v1286 = vadd.f32 %v1140, %v1285
    %v1287 = vpop.f32.mrf.mxu0
    %v1288 = vpop.f32.mrf.mxu0
    %v1289 = vadd.f32 %v1145, %v1288
    %v1290 = vpop.f32.mrf.mxu0
    %1291 = vdwg.mxu0
    %v1292 = vsub.f32 %v1238, %v46
    %v1293 = vmul.f32 %v1292, %v1292
    %v1294 = vrot.slane %v1293, 4
    %v1295 = vadd.f32 %v1293, %v1294
    %v1296 = vrot.slane %v1295, 2
    %v1297 = vadd.f32 %v1295, %v1296
    %v1298 = vrot.slane %v1297, 1
    %v1299 = vadd.f32 %v1297, %v1298
    %v1300 = vadd.f32 %v1299, 0.0
    %v1301 = vsub.f32 %v1241, %v47
    %v1302 = vmul.f32 %v1301, %v1301
    %v1303 = vrot.slane %v1302, 4
    %v1304 = vadd.f32 %v1302, %v1303
    %v1305 = vrot.slane %v1304, 2
    %v1306 = vadd.f32 %v1304, %v1305
    %v1307 = vrot.slane %v1306, 1
    %v1308 = vadd.f32 %v1306, %v1307
    %v1309 = vadd.f32 %v1300, %v1308
    %v1310 = vsub.f32 %v1246, %v48
    %v1311 = vmul.f32 %v1310, %v1310
    %v1312 = vrot.slane %v1311, 4
    %v1313 = vadd.f32 %v1311, %v1312
    %v1314 = vrot.slane %v1313, 2
    %v1315 = vadd.f32 %v1313, %v1314
    %v1316 = vrot.slane %v1315, 1
    %v1317 = vadd.f32 %v1315, %v1316
    %v1318 = vadd.f32 %v1309, %v1317
    %v1319 = vsub.f32 %v1249, %v49
    %v1320 = vmul.f32 %v1319, %v1319
    %v1321 = vrot.slane %v1320, 4
    %v1322 = vadd.f32 %v1320, %v1321
    %v1323 = vrot.slane %v1322, 2
    %v1324 = vadd.f32 %v1322, %v1323
    %v1325 = vrot.slane %v1324, 1
    %v1326 = vadd.f32 %v1324, %v1325
    %v1327 = vadd.f32 %v1318, %v1326
    %v1328 = vsub.f32 %v1254, %v50
    %v1329 = vmul.f32 %v1328, %v1328
    %v1330 = vrot.slane %v1329, 4
    %v1331 = vadd.f32 %v1329, %v1330
    %v1332 = vrot.slane %v1331, 2
    %v1333 = vadd.f32 %v1331, %v1332
    %v1334 = vrot.slane %v1333, 1
    %v1335 = vadd.f32 %v1333, %v1334
    %v1336 = vadd.f32 %v1327, %v1335
    %v1337 = vsub.f32 %v1257, %v51
    %v1338 = vmul.f32 %v1337, %v1337
    %v1339 = vrot.slane %v1338, 4
    %v1340 = vadd.f32 %v1338, %v1339
    %v1341 = vrot.slane %v1340, 2
    %v1342 = vadd.f32 %v1340, %v1341
    %v1343 = vrot.slane %v1342, 1
    %v1344 = vadd.f32 %v1342, %v1343
    %v1345 = vadd.f32 %v1336, %v1344
    %v1346 = vsub.f32 %v1262, %v52
    %v1347 = vmul.f32 %v1346, %v1346
    %v1348 = vrot.slane %v1347, 4
    %v1349 = vadd.f32 %v1347, %v1348
    %v1350 = vrot.slane %v1349, 2
    %v1351 = vadd.f32 %v1349, %v1350
    %v1352 = vrot.slane %v1351, 1
    %v1353 = vadd.f32 %v1351, %v1352
    %v1354 = vadd.f32 %v1345, %v1353
    %v1355 = vsub.f32 %v1265, %v53
    %v1356 = vmul.f32 %v1355, %v1355
    %v1357 = vrot.slane %v1356, 4
    %v1358 = vadd.f32 %v1356, %v1357
    %v1359 = vrot.slane %v1358, 2
    %v1360 = vadd.f32 %v1358, %v1359
    %v1361 = vrot.slane %v1360, 1
    %v1362 = vadd.f32 %v1360, %v1361
    %v1363 = vadd.f32 %v1354, %v1362
    %v1364 = vsub.f32 %v1270, %v54
    %v1365 = vmul.f32 %v1364, %v1364
    %v1366 = vrot.slane %v1365, 4
    %v1367 = vadd.f32 %v1365, %v1366
    %v1368 = vrot.slane %v1367, 2
    %v1369 = vadd.f32 %v1367, %v1368
    %v1370 = vrot.slane %v1369, 1
    %v1371 = vadd.f32 %v1369, %v1370
    %v1372 = vadd.f32 %v1363, %v1371
    %v1373 = vsub.f32 %v1273, %v55
    %v1374 = vmul.f32 %v1373, %v1373
    %v1375 = vrot.slane %v1374, 4
    %v1376 = vadd.f32 %v1374, %v1375
    %v1377 = vrot.slane %v1376, 2
    %v1378 = vadd.f32 %v1376, %v1377
    %v1379 = vrot.slane %v1378, 1
    %v1380 = vadd.f32 %v1378, %v1379
    %v1381 = vadd.f32 %v1372, %v1380
    %v1382 = vsub.f32 %v1278, %v56
    %v1383 = vmul.f32 %v1382, %v1382
    %v1384 = vrot.slane %v1383, 4
    %v1385 = vadd.f32 %v1383, %v1384
    %v1386 = vrot.slane %v1385, 2
    %v1387 = vadd.f32 %v1385, %v1386
    %v1388 = vrot.slane %v1387, 1
    %v1389 = vadd.f32 %v1387, %v1388
    %v1390 = vadd.f32 %v1381, %v1389
    %v1391 = vsub.f32 %v1281, %v57
    %v1392 = vmul.f32 %v1391, %v1391
    %v1393 = vrot.slane %v1392, 4
    %v1394 = vadd.f32 %v1392, %v1393
    %v1395 = vrot.slane %v1394, 2
    %v1396 = vadd.f32 %v1394, %v1395
    %v1397 = vrot.slane %v1396, 1
    %v1398 = vadd.f32 %v1396, %v1397
    %v1399 = vadd.f32 %v1390, %v1398
    %v1400 = vsub.f32 %v1286, %v58
    %v1401 = vmul.f32 %v1400, %v1400
    %v1402 = vrot.slane %v1401, 4
    %v1403 = vadd.f32 %v1401, %v1402
    %v1404 = vrot.slane %v1403, 2
    %v1405 = vadd.f32 %v1403, %v1404
    %v1406 = vrot.slane %v1405, 1
    %v1407 = vadd.f32 %v1405, %v1406
    %v1408 = vadd.f32 %v1399, %v1407
    %v1409 = vsub.f32 %v1289, %v59
    %v1410 = vmul.f32 %v1409, %v1409
    %v1411 = vrot.slane %v1410, 4
    %v1412 = vadd.f32 %v1410, %v1411
    %v1413 = vrot.slane %v1412, 2
    %v1414 = vadd.f32 %v1412, %v1413
    %v1415 = vrot.slane %v1414, 1
    %v1416 = vadd.f32 %v1414, %v1415
    %v1417 = vadd.f32 %v1408, %v1416
    %v1418 = vmul.f32 %v1417, 0.008928572
    %1419 = vst [vmem:[#allocation2] sm:$0x1] %v1418
    // Predicated region
    $region54: #{tpu_custom_call.1} parent=1 // pred_check
      _
    $region55: #{tpu_custom_call.1} parent=1 // pred_check_branch
      %1421 = sbr.rel (0) target = $region57
    $region56: #{tpu_custom_call.1} parent=1 // pred_region
      %s1423 = ssub.s32 16, 16
      %1424 = vsyncadd [#allocation3], %s1423
      %s1426 = sshll.u32 [#allocation2], 4
      %s1427 = int_to_ptr.vmem [resolvable:$true] %s1426
      %1429 = dma.vmem_to_hbm [thread:$0]  %s1427, 16, %s13, [#allocation3]
    $region57: #{tpu_custom_call.1} parent=1 // pred_fallthru
      _
    // Predicated region
    $region58: #{tpu_custom_call.1} parent=1 // pred_check
      _
    $region59: #{tpu_custom_call.1} parent=1 // pred_check_branch
      %1431 = sbr.rel (0) target = $region61
    $region60: #{tpu_custom_call.1} parent=1 // pred_region
      %1432 = dma.done [#allocation3], 16
    $region61: #{tpu_custom_call.1} parent=1 // pred_fallthru
      _
    %1433 = vsyncpa [#allocation3], 1

</llo_original>
